<compile_context>
chip_gen: v6e
topology: v6e:2x2x1
jax: 0.10.0
libtpu: 0.0.40
codegen_flags: <defaults>
</compile_context>

<pallas_src>
import math

import jax
import jax.numpy as jnp
import numpy as np
from jax import lax
from jax.experimental import pallas as pl
from jax.experimental.pallas import tpu as pltpu


def make_attention_kernel(BB, T, C, n_head):
    head_dim = C // n_head

    def kernel(x_ref, mask_ref,
               wqkv_ref, bqkv_ref, wp_ref, bp_ref,
               gamma_ref, beta_ref,
               out_ref):
        # ---- load + fused QKV projection (bf16 in, f32 accumulate) -------
        x = x_ref[...].reshape(BB * T, C)            # f32, kept for residual/LN
        xb = x.astype(jnp.bfloat16)

        qkv = jnp.dot(xb, wqkv_ref[...],
                      preferred_element_type=jnp.float32) + bqkv_ref[...]
        # 1/sqrt(head_dim) is already folded into the Q columns of wqkv/bqkv.
        q = qkv[:, :C].astype(jnp.bfloat16).reshape(BB, T, C)
        k = qkv[:, C:2 * C].astype(jnp.bfloat16).reshape(BB, T, C)
        v = qkv[:, 2 * C:].astype(jnp.bfloat16).reshape(BB, T, C)

        # ---- additive attention mask, built + broadcast ONCE per step ----
        # mask == 0  ->  add -1e9 to that key's scores (matches masked_fill
        # up to the degenerate "every key masked" row).
        neg = (mask_ref[...] == 0.0).astype(jnp.float32) * jnp.float32(-1e9)
        neg_b = jnp.broadcast_to(neg, (BB, T, T))     # hoisted out of head loop

        # ---- per-head attention (static unroll; batched over BB) ---------
        # NOTE: with small head_dim the single EUP port (jnp.exp) is the
        # likely binding slot, not the MXU, so matmul shapes are left simple.
        heads = []
        for h in range(n_head):
            lo = h * head_dim
            hi = lo + head_dim
            qh = q[:, :, lo:hi]                      # (BB, T, hd) bf16
            kh = k[:, :, lo:hi]
            vh = v[:, :, lo:hi]

            # QK^T expressed as a contraction-dim choice (no K transpose).
            att = lax.dot_general(
                qh, kh, (((2,), (2,)), ((0,), (0,))),
                preferred_element_type=jnp.float32)  # (BB, T, T) f32
            att = att + neg_b

            # stable softmax in f32; reciprocal goes to the EUP slot.
            att_max = jnp.max(att, axis=-1, keepdims=True)
            p = jnp.exp(att - att_max)
            denom = jnp.sum(p, axis=-1, keepdims=True)
            p = p * pl.reciprocal(denom, approx=True)

            # PV, f32 accumulation on the MXU.
            yh = lax.dot_general(
                p.astype(jnp.bfloat16), vh, (((2,), (1,)), ((0,), (0,))),
                preferred_element_type=jnp.float32)  # (BB, T, hd)
            heads.append(yh)

        # One lane-dense tile (all heads) instead of per-head narrow stores.
        y_cat = jnp.concatenate(heads, axis=-1).reshape(BB * T, C)

        # ---- output projection + residual + LayerNorm ---------------------
        y = jnp.dot(y_cat.astype(jnp.bfloat16), wp_ref[...],
                    preferred_element_type=jnp.float32) + bp_ref[...]
        z = y + x                                     # residual in f32

        mean = jnp.mean(z, axis=-1, keepdims=True)
        zc = z - mean
        var = jnp.mean(zc * zc, axis=-1, keepdims=True)
        zn = zc * lax.rsqrt(var + jnp.float32(1e-12))
        out = zn * gamma_ref[...] + beta_ref[...]

        out_ref[...] = out.reshape(BB, T, C)

    return kernel


def _physical_vmem_bytes():
    try:
        return int(pltpu.get_tpu_info().vmem_capacity_bytes)
    except Exception:
        return 64 << 20          # conservative fallback (v7x-sized)


def _vmem_budget_bytes(BB, T, C):
    # Rough live-set estimate per grid step: double-buffered f32 x/out blocks,
    # (possibly double-buffered) bf16 weights, bf16/f32 activations and the
    # per-head (BB, T, T) attention tiles, with 2x headroom.  Capped at 80% of
    # physical VMEM so compiler-internal scratch / semaphores keep headroom.
    io = 2 * 2 * BB * T * C * 4
    weights = 2 * ((3 * C * C + C * C) * 2 + 8 * C * 4)
    acts = 12 * BB * T * C * 4 + 3 * BB * T * T * 4
    est = 2 * (io + weights + acts) + (1 << 20)
    cap = int(_physical_vmem_bytes() * 0.80)
    return int(min(max(est, 16 << 20), cap))


def _pick_block_b(B, min_steps=4):
    """Largest divisor BB of B giving >= min_steps grid steps; relax to >= 2
    steps (keeps v7x's two TensorCores busy and pipelining alive); only fall
    back to a single step when B == 1."""
    for steps in (min_steps, 2):
        cands = [bb for bb in range(1, B + 1) if B % bb == 0 and B // bb >= steps]
        if cands:
            return max(cands)
    return B


def _build_call(B, T, C, n_head, BB, single_buffer_weights):
    kernel = make_attention_kernel(BB, T, C, n_head)
    wkw = {"pipeline_mode": pl.Buffered(1)} if single_buffer_weights else {}

    def wspec(shape):
        # Constant-index operands: same block every grid step.
        return pl.BlockSpec(shape, lambda b: (0, 0), **wkw)

    return pl.pallas_call(
        kernel,
        out_shape=jax.ShapeDtypeStruct((B, T, C), jnp.float32),
        grid_spec=pltpu.PrefetchScalarGridSpec(
            num_scalar_prefetch=0,
            grid=(B // BB,),
            in_specs=[
                pl.BlockSpec((BB, T, C), lambda b: (b, 0, 0)),    # x
                pl.BlockSpec((BB, 1, T), lambda b: (b, 0, 0)),    # mask
                wspec((C, 3 * C)),                                # Wqkv (bf16)
                wspec((1, 3 * C)),                                # bqkv
                wspec((C, C)),                                    # Wproj (bf16)
                wspec((1, C)),                                    # bproj
                wspec((1, C)),                                    # LN gamma
                wspec((1, C)),                                    # LN beta
            ],
            out_specs=pl.BlockSpec((BB, T, C), lambda b: (b, 0, 0)),
        ),
        compiler_params=pltpu.CompilerParams(
            dimension_semantics=("parallel",),
            vmem_limit_bytes=_vmem_budget_bytes(BB, T, C),
        ),
    )


def self_attention_forward(x, mask, params, n_head, block_b=None):
    """x: (B, T, C) f32; mask: (B, T) with 1 = attend, 0 = masked key."""
    B, T, C = x.shape
    assert C % n_head == 0
    head_dim = C // n_head
    BB = _pick_block_b(B) if block_b is None else block_b
    assert B % BB == 0
    scale = 1.0 / math.sqrt(head_dim)

    # Wrapper-side parameter layout (pure XLA plumbing, outside the kernel):
    # fuse Q/K/V weights into one (C, 3C) matrix, fold the attention scale
    # into the Q columns, cast matmul weights to bf16 (f32 accumulate inside).
    wqkv = jnp.concatenate(
        [params["wq"] * scale, params["wk"], params["wv"]], axis=1
    ).astype(jnp.bfloat16)                                    # (C, 3C)
    bqkv = jnp.concatenate(
        [params["bq"] * scale, params["bk"], params["bv"]], axis=1
    ).astype(jnp.float32)                                     # (1, 3C)
    wp = params["wp"].astype(jnp.bfloat16)                    # (C, C)
    bp = params["bp"].astype(jnp.float32)                     # (1, C)
    gamma = params["gamma"].astype(jnp.float32)               # (1, C)
    beta = params["beta"].astype(jnp.float32)                 # (1, C)
    mask3 = mask.astype(jnp.float32)[:, None, :]              # (B, 1, T)

    # TODO(synk): if the surrounding model is bf16, stream x/out as bf16
    # (halves HBM traffic); kept f32 here to match the PyTorch module dtype.
    args = (x.astype(jnp.float32), mask3, wqkv, bqkv, wp, bp, gamma, beta)

    try:
        return _build_call(B, T, C, n_head, BB, True)(*args)
    except Exception:
        # Fallback if Buffered(1) single-buffering is rejected by the
        # toolchain: use default double-buffered constant operands.
        return _build_call(B, T, C, n_head, BB, False)(*args)


def reference_forward(x, mask, params, n_head):
    """Pure-JAX f32 reference matching the PyTorch module semantics."""
    B, T, C = x.shape
    hd = C // n_head

    def lin(x_, w, b):
        return x_ @ w + b   # w already stored as (C_in, C_out)

    q = lin(x, params["wq"], params["bq"])
    k = lin(x, params["wk"], params["bk"])
    v = lin(x, params["wv"], params["bv"])

    q = q.reshape(B, T, n_head, hd).transpose(0, 2, 1, 3)
    k = k.reshape(B, T, n_head, hd).transpose(0, 2, 1, 3)
    v = v.reshape(B, T, n_head, hd).transpose(0, 2, 1, 3)

    att = jnp.einsum("bhqd,bhkd->bhqk", q, k) * (1.0 / math.sqrt(hd))
    m = mask[:, None, None, :]                       # (B,1,1,T) over keys
    att = jnp.where(m == 0, -1e9, att)
    att = att - jnp.max(att, axis=-1, keepdims=True)
    att = jnp.exp(att)
    att = att / jnp.sum(att, axis=-1, keepdims=True)

    y = jnp.einsum("bhqk,bhkd->bhqd", att, v)
    y = y.transpose(0, 2, 1, 3).reshape(B, T, C)
    y = lin(y, params["wp"], params["bp"])
    z = y + x
    mean = jnp.mean(z, axis=-1, keepdims=True)
    var = jnp.mean((z - mean) ** 2, axis=-1, keepdims=True)
    zn = (z - mean) / jnp.sqrt(var + 1e-12)
    return zn * params["gamma"] + params["beta"]


if __name__ == "__main__":
    # Small config consistent with the module: n_embd % n_head == 0.
    B, T, C, n_head = 2, 8, 32, 4

    key = jax.random.PRNGKey(0)
    keys = jax.random.split(key, 10)

    def init_w(k):
        # nn.Linear weight is (out, in); stored pre-transposed as (in, out).
        return jax.random.normal(k, (C, C), jnp.float32) * 0.05

    params = {
        "wq": init_w(keys[0]),
        "bq": jax.random.normal(keys[1], (1, C), jnp.float32) * 0.01,
        "wk": init_w(keys[2]),
        "bk": jax.random.normal(keys[3], (1, C), jnp.float32) * 0.01,
        "wv": init_w(keys[4]),
        "bv": jax.random.normal(keys[5], (1, C), jnp.float32) * 0.01,
        "wp": init_w(keys[6]),
        "bp": jax.random.normal(keys[7], (1, C), jnp.float32) * 0.01,
        "gamma": jnp.ones((1, C), jnp.float32),
        "beta": jnp.zeros((1, C), jnp.float32),
    }

    x = jax.random.normal(keys[8], (B, T, C), jnp.float32)

    # Deterministic mask: all ones except last two key positions of batch 1.
    mask = jnp.ones((B, T), jnp.float32)
    mask = mask.at[1, -2:].set(0.0)

    out = self_attention_forward(x, mask, params, n_head)
    out = jax.block_until_ready(out)

    # f32 reference; loose tolerance accounts for bf16 MXU inputs and the
    # approx (EUP) softmax reciprocal inside the kernel.
    ref = reference_forward(x, mask, params, n_head)
    np.testing.assert_allclose(np.asarray(out), np.asarray(ref),
                               rtol=2e-2, atol=2e-2)

    print("KERNEL_OK")
</pallas_src>

<mosaic_0001>
module attributes {stable_mosaic.version = 11 : i64} {
  func.func @kernel(%arg0: i32, %arg1: memref<1x8x32xf32, #tpu.memory_space<vmem>>, %arg2: memref<1x1x8xf32, #tpu.memory_space<vmem>>, %arg3: memref<32x96xbf16, #tpu.memory_space<vmem>>, %arg4: memref<1x96xf32, #tpu.memory_space<vmem>>, %arg5: memref<32x32xbf16, #tpu.memory_space<vmem>>, %arg6: memref<1x32xf32, #tpu.memory_space<vmem>>, %arg7: memref<1x32xf32, #tpu.memory_space<vmem>>, %arg8: memref<1x32xf32, #tpu.memory_space<vmem>>, %arg9: memref<1x8x32xf32, #tpu.memory_space<vmem>>) attributes {dimension_semantics = [#tpu.dimension_semantics<parallel>], iteration_bounds = array<i64: 2>, scalar_prefetch = 0 : i64, scratch_operands = 0 : i64, tpu.core_type = #tpu.core_type<tc>, window_params = [{transform_indices = @transform_0, window_bounds = array<i64: 1, 8, 32>}, {transform_indices = @transform_1, window_bounds = array<i64: 1, 1, 8>}, {pipeline_mode = #tpu.pipeline_mode<synchronous>, transform_indices = @transform_2, window_bounds = array<i64: 32, 96>}, {pipeline_mode = #tpu.pipeline_mode<synchronous>, transform_indices = @transform_3, window_bounds = array<i64: 1, 96>}, {pipeline_mode = #tpu.pipeline_mode<synchronous>, transform_indices = @transform_4, window_bounds = array<i64: 32, 32>}, {pipeline_mode = #tpu.pipeline_mode<synchronous>, transform_indices = @transform_5, window_bounds = array<i64: 1, 32>}, {pipeline_mode = #tpu.pipeline_mode<synchronous>, transform_indices = @transform_6, window_bounds = array<i64: 1, 32>}, {pipeline_mode = #tpu.pipeline_mode<synchronous>, transform_indices = @transform_7, window_bounds = array<i64: 1, 32>}, {transform_indices = @transform_8, window_bounds = array<i64: 1, 8, 32>}]} {
    %c0 = arith.constant 0 : index
    %c0_0 = arith.constant 0 : index
    %c0_1 = arith.constant 0 : index
    %0 = vector.load %arg1[%c0, %c0_0, %c0_1] : memref<1x8x32xf32, #tpu.memory_space<vmem>>, vector<1x8x32xf32>
    %1 = vector.shape_cast %0 : vector<1x8x32xf32> to vector<8x32xf32>
    %2 = arith.truncf %1 : vector<8x32xf32> to vector<8x32xbf16>
    %c0_2 = arith.constant 0 : index
    %c0_3 = arith.constant 0 : index
    %3 = vector.load %arg3[%c0_2, %c0_3] : memref<32x96xbf16, #tpu.memory_space<vmem>>, vector<32x96xbf16>
    %cst = arith.constant dense<0.000000e+00> : vector<8x96xf32>
    %4 = tpu.matmul %2, %3, %cst {dimension_numbers = #tpu.dot_dimension_numbers<[1], [0], [0], [1], [0, 0, 1, 1], [], []>} : vector<8x32xbf16>, vector<32x96xbf16>, vector<8x96xf32> -> vector<8x96xf32>
    %c0_4 = arith.constant 0 : index
    %c0_5 = arith.constant 0 : index
    %5 = vector.load %arg4[%c0_4, %c0_5] : memref<1x96xf32, #tpu.memory_space<vmem>>, vector<1x96xf32>
    %6 = vector.broadcast %5 : vector<1x96xf32> to vector<8x96xf32>
    %7 = arith.addf %4, %6 : vector<8x96xf32>
    %8 = vector.extract_strided_slice %7 {offsets = [0, 0], sizes = [8, 32], strides = [1, 1]} : vector<8x96xf32> to vector<8x32xf32>
    %9 = arith.truncf %8 : vector<8x32xf32> to vector<8x32xbf16>
    %10 = vector.shape_cast %9 : vector<8x32xbf16> to vector<1x8x32xbf16>
    %11 = vector.extract_strided_slice %7 {offsets = [0, 32], sizes = [8, 32], strides = [1, 1]} : vector<8x96xf32> to vector<8x32xf32>
    %12 = arith.truncf %11 : vector<8x32xf32> to vector<8x32xbf16>
    %13 = vector.shape_cast %12 : vector<8x32xbf16> to vector<1x8x32xbf16>
    %14 = vector.extract_strided_slice %7 {offsets = [0, 64], sizes = [8, 32], strides = [1, 1]} : vector<8x96xf32> to vector<8x32xf32>
    %15 = arith.truncf %14 : vector<8x32xf32> to vector<8x32xbf16>
    %16 = vector.shape_cast %15 : vector<8x32xbf16> to vector<1x8x32xbf16>
    %c0_6 = arith.constant 0 : index
    %c0_7 = arith.constant 0 : index
    %c0_8 = arith.constant 0 : index
    %17 = vector.load %arg2[%c0_6, %c0_7, %c0_8] : memref<1x1x8xf32, #tpu.memory_space<vmem>>, vector<1x1x8xf32>
    %cst_9 = arith.constant 0.000000e+00 : f32
    %18 = vector.broadcast %cst_9 : f32 to vector<1x1x8xf32>
    %19 = arith.cmpf oeq, %17, %18 : vector<1x1x8xf32>
    %20 = arith.extui %19 : vector<1x1x8xi1> to vector<1x1x8xi32>
    %21 = arith.sitofp %20 : vector<1x1x8xi32> to vector<1x1x8xf32>
    %cst_10 = arith.constant -1.000000e+09 : f32
    %22 = vector.broadcast %cst_10 : f32 to vector<1x1x8xf32>
    %23 = arith.mulf %21, %22 : vector<1x1x8xf32>
    %24 = vector.shape_cast %23 : vector<1x1x8xf32> to vector<1x1x8xf32>
    %25 = vector.broadcast %24 : vector<1x1x8xf32> to vector<1x8x8xf32>
    %26 = vector.extract_strided_slice %10 {offsets = [0, 0, 0], sizes = [1, 8, 8], strides = [1, 1, 1]} : vector<1x8x32xbf16> to vector<1x8x8xbf16>
    %27 = vector.extract_strided_slice %13 {offsets = [0, 0, 0], sizes = [1, 8, 8], strides = [1, 1, 1]} : vector<1x8x32xbf16> to vector<1x8x8xbf16>
    %28 = vector.extract_strided_slice %16 {offsets = [0, 0, 0], sizes = [1, 8, 8], strides = [1, 1, 1]} : vector<1x8x32xbf16> to vector<1x8x8xbf16>
    %cst_11 = arith.constant dense<0.000000e+00> : vector<1x8x8xf32>
    %29 = tpu.matmul %26, %27, %cst_11 {dimension_numbers = #tpu.dot_dimension_numbers<[2], [2], [1], [1], [0, 0, 0, 1, 1, 1], [0], [0]>} : vector<1x8x8xbf16>, vector<1x8x8xbf16>, vector<1x8x8xf32> -> vector<1x8x8xf32>
    %30 = arith.addf %29, %25 : vector<1x8x8xf32>
    %cst_12 = arith.constant dense<0xFF800000> : vector<1x8xf32>
    %31 = vector.multi_reduction <maximumf>, %30, %cst_12 [2] : vector<1x8x8xf32> to vector<1x8xf32>
    %32 = vector.shape_cast %31 : vector<1x8xf32> to vector<1x8x1xf32>
    %33 = vector.broadcast %32 : vector<1x8x1xf32> to vector<1x8x8xf32>
    %34 = arith.subf %30, %33 : vector<1x8x8xf32>
    %35 = math.exp %34 : vector<1x8x8xf32>
    %cst_13 = arith.constant dense<0.000000e+00> : vector<1x8xf32>
    %36 = vector.multi_reduction <add>, %35, %cst_13 [2] : vector<1x8x8xf32> to vector<1x8xf32>
    %37 = vector.shape_cast %36 : vector<1x8xf32> to vector<1x8x1xf32>
    %38 = tpu.reciprocal %37 {approx = true} : vector<1x8x1xf32> -> vector<1x8x1xf32>
    %39 = vector.broadcast %38 : vector<1x8x1xf32> to vector<1x8x8xf32>
    %40 = arith.mulf %35, %39 : vector<1x8x8xf32>
    %41 = arith.truncf %40 : vector<1x8x8xf32> to vector<1x8x8xbf16>
    %cst_14 = arith.constant dense<0.000000e+00> : vector<1x8x8xf32>
    %42 = tpu.matmul %41, %28, %cst_14 {dimension_numbers = #tpu.dot_dimension_numbers<[2], [1], [1], [2], [0, 0, 0, 1, 1, 2], [0], [0]>} : vector<1x8x8xbf16>, vector<1x8x8xbf16>, vector<1x8x8xf32> -> vector<1x8x8xf32>
    %43 = vector.extract_strided_slice %10 {offsets = [0, 0, 8], sizes = [1, 8, 8], strides = [1, 1, 1]} : vector<1x8x32xbf16> to vector<1x8x8xbf16>
    %44 = vector.extract_strided_slice %13 {offsets = [0, 0, 8], sizes = [1, 8, 8], strides = [1, 1, 1]} : vector<1x8x32xbf16> to vector<1x8x8xbf16>
    %45 = vector.extract_strided_slice %16 {offsets = [0, 0, 8], sizes = [1, 8, 8], strides = [1, 1, 1]} : vector<1x8x32xbf16> to vector<1x8x8xbf16>
    %cst_15 = arith.constant dense<0.000000e+00> : vector<1x8x8xf32>
    %46 = tpu.matmul %43, %44, %cst_15 {dimension_numbers = #tpu.dot_dimension_numbers<[2], [2], [1], [1], [0, 0, 0, 1, 1, 1], [0], [0]>} : vector<1x8x8xbf16>, vector<1x8x8xbf16>, vector<1x8x8xf32> -> vector<1x8x8xf32>
    %47 = arith.addf %46, %25 : vector<1x8x8xf32>
    %cst_16 = arith.constant dense<0xFF800000> : vector<1x8xf32>
    %48 = vector.multi_reduction <maximumf>, %47, %cst_16 [2] : vector<1x8x8xf32> to vector<1x8xf32>
    %49 = vector.shape_cast %48 : vector<1x8xf32> to vector<1x8x1xf32>
    %50 = vector.broadcast %49 : vector<1x8x1xf32> to vector<1x8x8xf32>
    %51 = arith.subf %47, %50 : vector<1x8x8xf32>
    %52 = math.exp %51 : vector<1x8x8xf32>
    %cst_17 = arith.constant dense<0.000000e+00> : vector<1x8xf32>
    %53 = vector.multi_reduction <add>, %52, %cst_17 [2] : vector<1x8x8xf32> to vector<1x8xf32>
    %54 = vector.shape_cast %53 : vector<1x8xf32> to vector<1x8x1xf32>
    %55 = tpu.reciprocal %54 {approx = true} : vector<1x8x1xf32> -> vector<1x8x1xf32>
    %56 = vector.broadcast %55 : vector<1x8x1xf32> to vector<1x8x8xf32>
    %57 = arith.mulf %52, %56 : vector<1x8x8xf32>
    %58 = arith.truncf %57 : vector<1x8x8xf32> to vector<1x8x8xbf16>
    %cst_18 = arith.constant dense<0.000000e+00> : vector<1x8x8xf32>
    %59 = tpu.matmul %58, %45, %cst_18 {dimension_numbers = #tpu.dot_dimension_numbers<[2], [1], [1], [2], [0, 0, 0, 1, 1, 2], [0], [0]>} : vector<1x8x8xbf16>, vector<1x8x8xbf16>, vector<1x8x8xf32> -> vector<1x8x8xf32>
    %60 = vector.extract_strided_slice %10 {offsets = [0, 0, 16], sizes = [1, 8, 8], strides = [1, 1, 1]} : vector<1x8x32xbf16> to vector<1x8x8xbf16>
    %61 = vector.extract_strided_slice %13 {offsets = [0, 0, 16], sizes = [1, 8, 8], strides = [1, 1, 1]} : vector<1x8x32xbf16> to vector<1x8x8xbf16>
    %62 = vector.extract_strided_slice %16 {offsets = [0, 0, 16], sizes = [1, 8, 8], strides = [1, 1, 1]} : vector<1x8x32xbf16> to vector<1x8x8xbf16>
    %cst_19 = arith.constant dense<0.000000e+00> : vector<1x8x8xf32>
    %63 = tpu.matmul %60, %61, %cst_19 {dimension_numbers = #tpu.dot_dimension_numbers<[2], [2], [1], [1], [0, 0, 0, 1, 1, 1], [0], [0]>} : vector<1x8x8xbf16>, vector<1x8x8xbf16>, vector<1x8x8xf32> -> vector<1x8x8xf32>
    %64 = arith.addf %63, %25 : vector<1x8x8xf32>
    %cst_20 = arith.constant dense<0xFF800000> : vector<1x8xf32>
    %65 = vector.multi_reduction <maximumf>, %64, %cst_20 [2] : vector<1x8x8xf32> to vector<1x8xf32>
    %66 = vector.shape_cast %65 : vector<1x8xf32> to vector<1x8x1xf32>
    %67 = vector.broadcast %66 : vector<1x8x1xf32> to vector<1x8x8xf32>
    %68 = arith.subf %64, %67 : vector<1x8x8xf32>
    %69 = math.exp %68 : vector<1x8x8xf32>
    %cst_21 = arith.constant dense<0.000000e+00> : vector<1x8xf32>
    %70 = vector.multi_reduction <add>, %69, %cst_21 [2] : vector<1x8x8xf32> to vector<1x8xf32>
    %71 = vector.shape_cast %70 : vector<1x8xf32> to vector<1x8x1xf32>
    %72 = tpu.reciprocal %71 {approx = true} : vector<1x8x1xf32> -> vector<1x8x1xf32>
    %73 = vector.broadcast %72 : vector<1x8x1xf32> to vector<1x8x8xf32>
    %74 = arith.mulf %69, %73 : vector<1x8x8xf32>
    %75 = arith.truncf %74 : vector<1x8x8xf32> to vector<1x8x8xbf16>
    %cst_22 = arith.constant dense<0.000000e+00> : vector<1x8x8xf32>
    %76 = tpu.matmul %75, %62, %cst_22 {dimension_numbers = #tpu.dot_dimension_numbers<[2], [1], [1], [2], [0, 0, 0, 1, 1, 2], [0], [0]>} : vector<1x8x8xbf16>, vector<1x8x8xbf16>, vector<1x8x8xf32> -> vector<1x8x8xf32>
    %77 = vector.extract_strided_slice %10 {offsets = [0, 0, 24], sizes = [1, 8, 8], strides = [1, 1, 1]} : vector<1x8x32xbf16> to vector<1x8x8xbf16>
    %78 = vector.extract_strided_slice %13 {offsets = [0, 0, 24], sizes = [1, 8, 8], strides = [1, 1, 1]} : vector<1x8x32xbf16> to vector<1x8x8xbf16>
    %79 = vector.extract_strided_slice %16 {offsets = [0, 0, 24], sizes = [1, 8, 8], strides = [1, 1, 1]} : vector<1x8x32xbf16> to vector<1x8x8xbf16>
    %cst_23 = arith.constant dense<0.000000e+00> : vector<1x8x8xf32>
    %80 = tpu.matmul %77, %78, %cst_23 {dimension_numbers = #tpu.dot_dimension_numbers<[2], [2], [1], [1], [0, 0, 0, 1, 1, 1], [0], [0]>} : vector<1x8x8xbf16>, vector<1x8x8xbf16>, vector<1x8x8xf32> -> vector<1x8x8xf32>
    %81 = arith.addf %80, %25 : vector<1x8x8xf32>
    %cst_24 = arith.constant dense<0xFF800000> : vector<1x8xf32>
    %82 = vector.multi_reduction <maximumf>, %81, %cst_24 [2] : vector<1x8x8xf32> to vector<1x8xf32>
    %83 = vector.shape_cast %82 : vector<1x8xf32> to vector<1x8x1xf32>
    %84 = vector.broadcast %83 : vector<1x8x1xf32> to vector<1x8x8xf32>
    %85 = arith.subf %81, %84 : vector<1x8x8xf32>
    %86 = math.exp %85 : vector<1x8x8xf32>
    %cst_25 = arith.constant dense<0.000000e+00> : vector<1x8xf32>
    %87 = vector.multi_reduction <add>, %86, %cst_25 [2] : vector<1x8x8xf32> to vector<1x8xf32>
    %88 = vector.shape_cast %87 : vector<1x8xf32> to vector<1x8x1xf32>
    %89 = tpu.reciprocal %88 {approx = true} : vector<1x8x1xf32> -> vector<1x8x1xf32>
    %90 = vector.broadcast %89 : vector<1x8x1xf32> to vector<1x8x8xf32>
    %91 = arith.mulf %86, %90 : vector<1x8x8xf32>
    %92 = arith.truncf %91 : vector<1x8x8xf32> to vector<1x8x8xbf16>
    %cst_26 = arith.constant dense<0.000000e+00> : vector<1x8x8xf32>
    %93 = tpu.matmul %92, %79, %cst_26 {dimension_numbers = #tpu.dot_dimension_numbers<[2], [1], [1], [2], [0, 0, 0, 1, 1, 2], [0], [0]>} : vector<1x8x8xbf16>, vector<1x8x8xbf16>, vector<1x8x8xf32> -> vector<1x8x8xf32>
    %94 = tpu.concatenate %42, %59, %76, %93 in 2 : vector<1x8x8xf32>, vector<1x8x8xf32>, vector<1x8x8xf32>, vector<1x8x8xf32> -> vector<1x8x32xf32>
    %95 = vector.shape_cast %94 : vector<1x8x32xf32> to vector<8x32xf32>
    %96 = arith.truncf %95 : vector<8x32xf32> to vector<8x32xbf16>
    %c0_27 = arith.constant 0 : index
    %c0_28 = arith.constant 0 : index
    %97 = vector.load %arg5[%c0_27, %c0_28] : memref<32x32xbf16, #tpu.memory_space<vmem>>, vector<32x32xbf16>
    %cst_29 = arith.constant dense<0.000000e+00> : vector<8x32xf32>
    %98 = tpu.matmul %96, %97, %cst_29 {dimension_numbers = #tpu.dot_dimension_numbers<[1], [0], [0], [1], [0, 0, 1, 1], [], []>} : vector<8x32xbf16>, vector<32x32xbf16>, vector<8x32xf32> -> vector<8x32xf32>
    %c0_30 = arith.constant 0 : index
    %c0_31 = arith.constant 0 : index
    %99 = vector.load %arg6[%c0_30, %c0_31] : memref<1x32xf32, #tpu.memory_space<vmem>>, vector<1x32xf32>
    %100 = vector.broadcast %99 : vector<1x32xf32> to vector<8x32xf32>
    %101 = arith.addf %98, %100 : vector<8x32xf32>
    %102 = arith.addf %101, %1 : vector<8x32xf32>
    %cst_32 = arith.constant dense<0.000000e+00> : vector<8xf32>
    %103 = vector.multi_reduction <add>, %102, %cst_32 [1] : vector<8x32xf32> to vector<8xf32>
    %104 = vector.shape_cast %103 : vector<8xf32> to vector<8x1xf32>
    %cst_33 = arith.constant 3.200000e+01 : f32
    %105 = vector.broadcast %cst_33 : f32 to vector<8x1xf32>
    %106 = arith.divf %104, %105 : vector<8x1xf32>
    %107 = vector.broadcast %106 : vector<8x1xf32> to vector<8x32xf32>
    %108 = arith.subf %102, %107 : vector<8x32xf32>
    %109 = arith.mulf %108, %108 : vector<8x32xf32>
    %cst_34 = arith.constant dense<0.000000e+00> : vector<8xf32>
    %110 = vector.multi_reduction <add>, %109, %cst_34 [1] : vector<8x32xf32> to vector<8xf32>
    %111 = vector.shape_cast %110 : vector<8xf32> to vector<8x1xf32>
    %cst_35 = arith.constant 3.200000e+01 : f32
    %112 = vector.broadcast %cst_35 : f32 to vector<8x1xf32>
    %113 = arith.divf %111, %112 : vector<8x1xf32>
    %cst_36 = arith.constant 9.99999996E-13 : f32
    %114 = vector.broadcast %cst_36 : f32 to vector<8x1xf32>
    %115 = arith.addf %113, %114 : vector<8x1xf32>
    %116 = math.rsqrt %115 : vector<8x1xf32>
    %117 = vector.broadcast %116 : vector<8x1xf32> to vector<8x32xf32>
    %118 = arith.mulf %108, %117 : vector<8x32xf32>
    %c0_37 = arith.constant 0 : index
    %c0_38 = arith.constant 0 : index
    %119 = vector.load %arg7[%c0_37, %c0_38] : memref<1x32xf32, #tpu.memory_space<vmem>>, vector<1x32xf32>
    %120 = vector.broadcast %119 : vector<1x32xf32> to vector<8x32xf32>
    %121 = arith.mulf %118, %120 : vector<8x32xf32>
    %c0_39 = arith.constant 0 : index
    %c0_40 = arith.constant 0 : index
    %122 = vector.load %arg8[%c0_39, %c0_40] : memref<1x32xf32, #tpu.memory_space<vmem>>, vector<1x32xf32>
    %123 = vector.broadcast %122 : vector<1x32xf32> to vector<8x32xf32>
    %124 = arith.addf %121, %123 : vector<8x32xf32>
    %125 = vector.shape_cast %124 : vector<8x32xf32> to vector<1x8x32xf32>
    %c0_41 = arith.constant 0 : index
    %c0_42 = arith.constant 0 : index
    %c0_43 = arith.constant 0 : index
    %126 = vector.load %arg9[%c0_41, %c0_42, %c0_43] : memref<1x8x32xf32, #tpu.memory_space<vmem>>, vector<1x8x32xf32>
    tpu.vector_store %arg9[%c0_41, %c0_42, %c0_43], %125 {strides = array<i32>} : memref<1x8x32xf32, #tpu.memory_space<vmem>>, vector<1x8x32xf32>,
    return
  }
  func.func @transform_0(%arg0: i32) -> (i32, i32, i32) {
    %c0_i32 = arith.constant 0 : i32
    %c0_i32_0 = arith.constant 0 : i32
    %c0_i32_1 = arith.constant 0 : i32
    return %arg0, %c0_i32, %c0_i32_0 : i32, i32, i32
  }
  func.func @transform_1(%arg0: i32) -> (i32, i32, i32) {
    %c0_i32 = arith.constant 0 : i32
    %c0_i32_0 = arith.constant 0 : i32
    %c0_i32_1 = arith.constant 0 : i32
    return %arg0, %c0_i32, %c0_i32_0 : i32, i32, i32
  }
  func.func @transform_2(%arg0: i32) -> (i32, i32) {
    %c0_i32 = arith.constant 0 : i32
    %c0_i32_0 = arith.constant 0 : i32
    %c0_i32_1 = arith.constant 0 : i32
    return %c0_i32, %c0_i32_0 : i32, i32
  }
  func.func @transform_3(%arg0: i32) -> (i32, i32) {
    %c0_i32 = arith.constant 0 : i32
    %c0_i32_0 = arith.constant 0 : i32
    %c0_i32_1 = arith.constant 0 : i32
    return %c0_i32, %c0_i32_0 : i32, i32
  }
  func.func @transform_4(%arg0: i32) -> (i32, i32) {
    %c0_i32 = arith.constant 0 : i32
    %c0_i32_0 = arith.constant 0 : i32
    %c0_i32_1 = arith.constant 0 : i32
    return %c0_i32, %c0_i32_0 : i32, i32
  }
  func.func @transform_5(%arg0: i32) -> (i32, i32) {
    %c0_i32 = arith.constant 0 : i32
    %c0_i32_0 = arith.constant 0 : i32
    %c0_i32_1 = arith.constant 0 : i32
    return %c0_i32, %c0_i32_0 : i32, i32
  }
  func.func @transform_6(%arg0: i32) -> (i32, i32) {
    %c0_i32 = arith.constant 0 : i32
    %c0_i32_0 = arith.constant 0 : i32
    %c0_i32_1 = arith.constant 0 : i32
    return %c0_i32, %c0_i32_0 : i32, i32
  }
  func.func @transform_7(%arg0: i32) -> (i32, i32) {
    %c0_i32 = arith.constant 0 : i32
    %c0_i32_0 = arith.constant 0 : i32
    %c0_i32_1 = arith.constant 0 : i32
    return %c0_i32, %c0_i32_0 : i32, i32
  }
  func.func @transform_8(%arg0: i32) -> (i32, i32, i32) {
    %c0_i32 = arith.constant 0 : i32
    %c0_i32_0 = arith.constant 0 : i32
    %c0_i32_1 = arith.constant 0 : i32
    return %arg0, %c0_i32, %c0_i32_0 : i32, i32, i32
  }
}

module attributes {stable_mosaic.version = 11 : i64} {
  func.func @kernel(%arg0: i32, %arg1: memref<1x8x32xf32, #tpu.memory_space<vmem>>, %arg2: memref<1x1x8xf32, #tpu.memory_space<vmem>>, %arg3: memref<32x96xbf16, #tpu.memory_space<vmem>>, %arg4: memref<1x96xf32, #tpu.memory_space<vmem>>, %arg5: memref<32x32xbf16, #tpu.memory_space<vmem>>, %arg6: memref<1x32xf32, #tpu.memory_space<vmem>>, %arg7: memref<1x32xf32, #tpu.memory_space<vmem>>, %arg8: memref<1x32xf32, #tpu.memory_space<vmem>>, %arg9: memref<1x8x32xf32, #tpu.memory_space<vmem>>) attributes {dimension_semantics = [#tpu.dimension_semantics<parallel>], iteration_bounds = array<i64: 2>, scalar_prefetch = 0 : i64, scratch_operands = 0 : i64, tpu.core_type = #tpu.core_type<tc>, window_params = [{transform_indices = @transform_0, window_bounds = array<i64: 1, 8, 32>}, {transform_indices = @transform_1, window_bounds = array<i64: 1, 1, 8>}, {pipeline_mode = #tpu.pipeline_mode<synchronous>, transform_indices = @transform_2, window_bounds = array<i64: 32, 96>}, {pipeline_mode = #tpu.pipeline_mode<synchronous>, transform_indices = @transform_3, window_bounds = array<i64: 1, 96>}, {pipeline_mode = #tpu.pipeline_mode<synchronous>, transform_indices = @transform_4, window_bounds = array<i64: 32, 32>}, {pipeline_mode = #tpu.pipeline_mode<synchronous>, transform_indices = @transform_5, window_bounds = array<i64: 1, 32>}, {pipeline_mode = #tpu.pipeline_mode<synchronous>, transform_indices = @transform_6, window_bounds = array<i64: 1, 32>}, {pipeline_mode = #tpu.pipeline_mode<synchronous>, transform_indices = @transform_7, window_bounds = array<i64: 1, 32>}, {transform_indices = @transform_8, window_bounds = array<i64: 1, 8, 32>}]} {
    %c0 = arith.constant 0 : index
    %c0_0 = arith.constant 0 : index
    %c0_1 = arith.constant 0 : index
    %0 = vector.load %arg1[%c0, %c0_0, %c0_1] : memref<1x8x32xf32, #tpu.memory_space<vmem>>, vector<1x8x32xf32>
    %1 = vector.shape_cast %0 : vector<1x8x32xf32> to vector<8x32xf32>
    %2 = arith.truncf %1 : vector<8x32xf32> to vector<8x32xbf16>
    %c0_2 = arith.constant 0 : index
    %c0_3 = arith.constant 0 : index
    %3 = vector.load %arg3[%c0_2, %c0_3] : memref<32x96xbf16, #tpu.memory_space<vmem>>, vector<32x96xbf16>
    %cst = arith.constant dense<0.000000e+00> : vector<8x96xf32>
    %4 = tpu.matmul %2, %3, %cst {dimension_numbers = #tpu.dot_dimension_numbers<[1], [0], [0], [1], [0, 0, 1, 1], [], []>} : vector<8x32xbf16>, vector<32x96xbf16>, vector<8x96xf32> -> vector<8x96xf32>
    %c0_4 = arith.constant 0 : index
    %c0_5 = arith.constant 0 : index
    %5 = vector.load %arg4[%c0_4, %c0_5] : memref<1x96xf32, #tpu.memory_space<vmem>>, vector<1x96xf32>
    %6 = vector.broadcast %5 : vector<1x96xf32> to vector<8x96xf32>
    %7 = arith.addf %4, %6 : vector<8x96xf32>
    %8 = vector.extract_strided_slice %7 {offsets = [0, 0], sizes = [8, 32], strides = [1, 1]} : vector<8x96xf32> to vector<8x32xf32>
    %9 = arith.truncf %8 : vector<8x32xf32> to vector<8x32xbf16>
    %10 = vector.shape_cast %9 : vector<8x32xbf16> to vector<1x8x32xbf16>
    %11 = vector.extract_strided_slice %7 {offsets = [0, 32], sizes = [8, 32], strides = [1, 1]} : vector<8x96xf32> to vector<8x32xf32>
    %12 = arith.truncf %11 : vector<8x32xf32> to vector<8x32xbf16>
    %13 = vector.shape_cast %12 : vector<8x32xbf16> to vector<1x8x32xbf16>
    %14 = vector.extract_strided_slice %7 {offsets = [0, 64], sizes = [8, 32], strides = [1, 1]} : vector<8x96xf32> to vector<8x32xf32>
    %15 = arith.truncf %14 : vector<8x32xf32> to vector<8x32xbf16>
    %16 = vector.shape_cast %15 : vector<8x32xbf16> to vector<1x8x32xbf16>
    %c0_6 = arith.constant 0 : index
    %c0_7 = arith.constant 0 : index
    %c0_8 = arith.constant 0 : index
    %17 = vector.load %arg2[%c0_6, %c0_7, %c0_8] : memref<1x1x8xf32, #tpu.memory_space<vmem>>, vector<1x1x8xf32>
    %cst_9 = arith.constant 0.000000e+00 : f32
    %18 = vector.broadcast %cst_9 : f32 to vector<1x1x8xf32>
    %19 = arith.cmpf oeq, %17, %18 : vector<1x1x8xf32>
    %20 = arith.extui %19 : vector<1x1x8xi1> to vector<1x1x8xi32>
    %21 = arith.sitofp %20 : vector<1x1x8xi32> to vector<1x1x8xf32>
    %cst_10 = arith.constant -1.000000e+09 : f32
    %22 = vector.broadcast %cst_10 : f32 to vector<1x1x8xf32>
    %23 = arith.mulf %21, %22 : vector<1x1x8xf32>
    %24 = vector.shape_cast %23 : vector<1x1x8xf32> to vector<1x1x8xf32>
    %25 = vector.broadcast %24 : vector<1x1x8xf32> to vector<1x8x8xf32>
    %26 = vector.extract_strided_slice %10 {offsets = [0, 0, 0], sizes = [1, 8, 8], strides = [1, 1, 1]} : vector<1x8x32xbf16> to vector<1x8x8xbf16>
    %27 = vector.extract_strided_slice %13 {offsets = [0, 0, 0], sizes = [1, 8, 8], strides = [1, 1, 1]} : vector<1x8x32xbf16> to vector<1x8x8xbf16>
    %28 = vector.extract_strided_slice %16 {offsets = [0, 0, 0], sizes = [1, 8, 8], strides = [1, 1, 1]} : vector<1x8x32xbf16> to vector<1x8x8xbf16>
    %cst_11 = arith.constant dense<0.000000e+00> : vector<1x8x8xf32>
    %29 = tpu.matmul %26, %27, %cst_11 {dimension_numbers = #tpu.dot_dimension_numbers<[2], [2], [1], [1], [0, 0, 0, 1, 1, 1], [0], [0]>} : vector<1x8x8xbf16>, vector<1x8x8xbf16>, vector<1x8x8xf32> -> vector<1x8x8xf32>
    %30 = arith.addf %29, %25 : vector<1x8x8xf32>
    %cst_12 = arith.constant dense<0xFF800000> : vector<1x8xf32>
    %31 = vector.multi_reduction <maximumf>, %30, %cst_12 [2] : vector<1x8x8xf32> to vector<1x8xf32>
    %32 = vector.shape_cast %31 : vector<1x8xf32> to vector<1x8x1xf32>
    %33 = vector.broadcast %32 : vector<1x8x1xf32> to vector<1x8x8xf32>
    %34 = arith.subf %30, %33 : vector<1x8x8xf32>
    %35 = math.exp %34 : vector<1x8x8xf32>
    %cst_13 = arith.constant dense<0.000000e+00> : vector<1x8xf32>
    %36 = vector.multi_reduction <add>, %35, %cst_13 [2] : vector<1x8x8xf32> to vector<1x8xf32>
    %37 = vector.shape_cast %36 : vector<1x8xf32> to vector<1x8x1xf32>
    %38 = tpu.reciprocal %37 {approx = true} : vector<1x8x1xf32> -> vector<1x8x1xf32>
    %39 = vector.broadcast %38 : vector<1x8x1xf32> to vector<1x8x8xf32>
    %40 = arith.mulf %35, %39 : vector<1x8x8xf32>
    %41 = arith.truncf %40 : vector<1x8x8xf32> to vector<1x8x8xbf16>
    %cst_14 = arith.constant dense<0.000000e+00> : vector<1x8x8xf32>
    %42 = tpu.matmul %41, %28, %cst_14 {dimension_numbers = #tpu.dot_dimension_numbers<[2], [1], [1], [2], [0, 0, 0, 1, 1, 2], [0], [0]>} : vector<1x8x8xbf16>, vector<1x8x8xbf16>, vector<1x8x8xf32> -> vector<1x8x8xf32>
    %43 = vector.extract_strided_slice %10 {offsets = [0, 0, 8], sizes = [1, 8, 8], strides = [1, 1, 1]} : vector<1x8x32xbf16> to vector<1x8x8xbf16>
    %44 = vector.extract_strided_slice %13 {offsets = [0, 0, 8], sizes = [1, 8, 8], strides = [1, 1, 1]} : vector<1x8x32xbf16> to vector<1x8x8xbf16>
    %45 = vector.extract_strided_slice %16 {offsets = [0, 0, 8], sizes = [1, 8, 8], strides = [1, 1, 1]} : vector<1x8x32xbf16> to vector<1x8x8xbf16>
    %cst_15 = arith.constant dense<0.000000e+00> : vector<1x8x8xf32>
    %46 = tpu.matmul %43, %44, %cst_15 {dimension_numbers = #tpu.dot_dimension_numbers<[2], [2], [1], [1], [0, 0, 0, 1, 1, 1], [0], [0]>} : vector<1x8x8xbf16>, vector<1x8x8xbf16>, vector<1x8x8xf32> -> vector<1x8x8xf32>
    %47 = arith.addf %46, %25 : vector<1x8x8xf32>
    %cst_16 = arith.constant dense<0xFF800000> : vector<1x8xf32>
    %48 = vector.multi_reduction <maximumf>, %47, %cst_16 [2] : vector<1x8x8xf32> to vector<1x8xf32>
    %49 = vector.shape_cast %48 : vector<1x8xf32> to vector<1x8x1xf32>
    %50 = vector.broadcast %49 : vector<1x8x1xf32> to vector<1x8x8xf32>
    %51 = arith.subf %47, %50 : vector<1x8x8xf32>
    %52 = math.exp %51 : vector<1x8x8xf32>
    %cst_17 = arith.constant dense<0.000000e+00> : vector<1x8xf32>
    %53 = vector.multi_reduction <add>, %52, %cst_17 [2] : vector<1x8x8xf32> to vector<1x8xf32>
    %54 = vector.shape_cast %53 : vector<1x8xf32> to vector<1x8x1xf32>
    %55 = tpu.reciprocal %54 {approx = true} : vector<1x8x1xf32> -> vector<1x8x1xf32>
    %56 = vector.broadcast %55 : vector<1x8x1xf32> to vector<1x8x8xf32>
    %57 = arith.mulf %52, %56 : vector<1x8x8xf32>
    %58 = arith.truncf %57 : vector<1x8x8xf32> to vector<1x8x8xbf16>
    %cst_18 = arith.constant dense<0.000000e+00> : vector<1x8x8xf32>
    %59 = tpu.matmul %58, %45, %cst_18 {dimension_numbers = #tpu.dot_dimension_numbers<[2], [1], [1], [2], [0, 0, 0, 1, 1, 2], [0], [0]>} : vector<1x8x8xbf16>, vector<1x8x8xbf16>, vector<1x8x8xf32> -> vector<1x8x8xf32>
    %60 = vector.extract_strided_slice %10 {offsets = [0, 0, 16], sizes = [1, 8, 8], strides = [1, 1, 1]} : vector<1x8x32xbf16> to vector<1x8x8xbf16>
    %61 = vector.extract_strided_slice %13 {offsets = [0, 0, 16], sizes = [1, 8, 8], strides = [1, 1, 1]} : vector<1x8x32xbf16> to vector<1x8x8xbf16>
    %62 = vector.extract_strided_slice %16 {offsets = [0, 0, 16], sizes = [1, 8, 8], strides = [1, 1, 1]} : vector<1x8x32xbf16> to vector<1x8x8xbf16>
    %cst_19 = arith.constant dense<0.000000e+00> : vector<1x8x8xf32>
    %63 = tpu.matmul %60, %61, %cst_19 {dimension_numbers = #tpu.dot_dimension_numbers<[2], [2], [1], [1], [0, 0, 0, 1, 1, 1], [0], [0]>} : vector<1x8x8xbf16>, vector<1x8x8xbf16>, vector<1x8x8xf32> -> vector<1x8x8xf32>
    %64 = arith.addf %63, %25 : vector<1x8x8xf32>
    %cst_20 = arith.constant dense<0xFF800000> : vector<1x8xf32>
    %65 = vector.multi_reduction <maximumf>, %64, %cst_20 [2] : vector<1x8x8xf32> to vector<1x8xf32>
    %66 = vector.shape_cast %65 : vector<1x8xf32> to vector<1x8x1xf32>
    %67 = vector.broadcast %66 : vector<1x8x1xf32> to vector<1x8x8xf32>
    %68 = arith.subf %64, %67 : vector<1x8x8xf32>
    %69 = math.exp %68 : vector<1x8x8xf32>
    %cst_21 = arith.constant dense<0.000000e+00> : vector<1x8xf32>
    %70 = vector.multi_reduction <add>, %69, %cst_21 [2] : vector<1x8x8xf32> to vector<1x8xf32>
    %71 = vector.shape_cast %70 : vector<1x8xf32> to vector<1x8x1xf32>
    %72 = tpu.reciprocal %71 {approx = true} : vector<1x8x1xf32> -> vector<1x8x1xf32>
    %73 = vector.broadcast %72 : vector<1x8x1xf32> to vector<1x8x8xf32>
    %74 = arith.mulf %69, %73 : vector<1x8x8xf32>
    %75 = arith.truncf %74 : vector<1x8x8xf32> to vector<1x8x8xbf16>
    %cst_22 = arith.constant dense<0.000000e+00> : vector<1x8x8xf32>
    %76 = tpu.matmul %75, %62, %cst_22 {dimension_numbers = #tpu.dot_dimension_numbers<[2], [1], [1], [2], [0, 0, 0, 1, 1, 2], [0], [0]>} : vector<1x8x8xbf16>, vector<1x8x8xbf16>, vector<1x8x8xf32> -> vector<1x8x8xf32>
    %77 = vector.extract_strided_slice %10 {offsets = [0, 0, 24], sizes = [1, 8, 8], strides = [1, 1, 1]} : vector<1x8x32xbf16> to vector<1x8x8xbf16>
    %78 = vector.extract_strided_slice %13 {offsets = [0, 0, 24], sizes = [1, 8, 8], strides = [1, 1, 1]} : vector<1x8x32xbf16> to vector<1x8x8xbf16>
    %79 = vector.extract_strided_slice %16 {offsets = [0, 0, 24], sizes = [1, 8, 8], strides = [1, 1, 1]} : vector<1x8x32xbf16> to vector<1x8x8xbf16>
    %cst_23 = arith.constant dense<0.000000e+00> : vector<1x8x8xf32>
    %80 = tpu.matmul %77, %78, %cst_23 {dimension_numbers = #tpu.dot_dimension_numbers<[2], [2], [1], [1], [0, 0, 0, 1, 1, 1], [0], [0]>} : vector<1x8x8xbf16>, vector<1x8x8xbf16>, vector<1x8x8xf32> -> vector<1x8x8xf32>
    %81 = arith.addf %80, %25 : vector<1x8x8xf32>
    %cst_24 = arith.constant dense<0xFF800000> : vector<1x8xf32>
    %82 = vector.multi_reduction <maximumf>, %81, %cst_24 [2] : vector<1x8x8xf32> to vector<1x8xf32>
    %83 = vector.shape_cast %82 : vector<1x8xf32> to vector<1x8x1xf32>
    %84 = vector.broadcast %83 : vector<1x8x1xf32> to vector<1x8x8xf32>
    %85 = arith.subf %81, %84 : vector<1x8x8xf32>
    %86 = math.exp %85 : vector<1x8x8xf32>
    %cst_25 = arith.constant dense<0.000000e+00> : vector<1x8xf32>
    %87 = vector.multi_reduction <add>, %86, %cst_25 [2] : vector<1x8x8xf32> to vector<1x8xf32>
    %88 = vector.shape_cast %87 : vector<1x8xf32> to vector<1x8x1xf32>
    %89 = tpu.reciprocal %88 {approx = true} : vector<1x8x1xf32> -> vector<1x8x1xf32>
    %90 = vector.broadcast %89 : vector<1x8x1xf32> to vector<1x8x8xf32>
    %91 = arith.mulf %86, %90 : vector<1x8x8xf32>
    %92 = arith.truncf %91 : vector<1x8x8xf32> to vector<1x8x8xbf16>
    %cst_26 = arith.constant dense<0.000000e+00> : vector<1x8x8xf32>
    %93 = tpu.matmul %92, %79, %cst_26 {dimension_numbers = #tpu.dot_dimension_numbers<[2], [1], [1], [2], [0, 0, 0, 1, 1, 2], [0], [0]>} : vector<1x8x8xbf16>, vector<1x8x8xbf16>, vector<1x8x8xf32> -> vector<1x8x8xf32>
    %94 = tpu.concatenate %42, %59, %76, %93 in 2 : vector<1x8x8xf32>, vector<1x8x8xf32>, vector<1x8x8xf32>, vector<1x8x8xf32> -> vector<1x8x32xf32>
    %95 = vector.shape_cast %94 : vector<1x8x32xf32> to vector<8x32xf32>
    %96 = arith.truncf %95 : vector<8x32xf32> to vector<8x32xbf16>
    %c0_27 = arith.constant 0 : index
    %c0_28 = arith.constant 0 : index
    %97 = vector.load %arg5[%c0_27, %c0_28] : memref<32x32xbf16, #tpu.memory_space<vmem>>, vector<32x32xbf16>
    %cst_29 = arith.constant dense<0.000000e+00> : vector<8x32xf32>
    %98 = tpu.matmul %96, %97, %cst_29 {dimension_numbers = #tpu.dot_dimension_numbers<[1], [0], [0], [1], [0, 0, 1, 1], [], []>} : vector<8x32xbf16>, vector<32x32xbf16>, vector<8x32xf32> -> vector<8x32xf32>
    %c0_30 = arith.constant 0 : index
    %c0_31 = arith.constant 0 : index
    %99 = vector.load %arg6[%c0_30, %c0_31] : memref<1x32xf32, #tpu.memory_space<vmem>>, vector<1x32xf32>
    %100 = vector.broadcast %99 : vector<1x32xf32> to vector<8x32xf32>
    %101 = arith.addf %98, %100 : vector<8x32xf32>
    %102 = arith.addf %101, %1 : vector<8x32xf32>
    %cst_32 = arith.constant dense<0.000000e+00> : vector<8xf32>
    %103 = vector.multi_reduction <add>, %102, %cst_32 [1] : vector<8x32xf32> to vector<8xf32>
    %104 = vector.shape_cast %103 : vector<8xf32> to vector<8x1xf32>
    %cst_33 = arith.constant 3.200000e+01 : f32
    %105 = vector.broadcast %cst_33 : f32 to vector<8x1xf32>
    %106 = arith.divf %104, %105 : vector<8x1xf32>
    %107 = vector.broadcast %106 : vector<8x1xf32> to vector<8x32xf32>
    %108 = arith.subf %102, %107 : vector<8x32xf32>
    %109 = arith.mulf %108, %108 : vector<8x32xf32>
    %cst_34 = arith.constant dense<0.000000e+00> : vector<8xf32>
    %110 = vector.multi_reduction <add>, %109, %cst_34 [1] : vector<8x32xf32> to vector<8xf32>
    %111 = vector.shape_cast %110 : vector<8xf32> to vector<8x1xf32>
    %cst_35 = arith.constant 3.200000e+01 : f32
    %112 = vector.broadcast %cst_35 : f32 to vector<8x1xf32>
    %113 = arith.divf %111, %112 : vector<8x1xf32>
    %cst_36 = arith.constant 9.99999996E-13 : f32
    %114 = vector.broadcast %cst_36 : f32 to vector<8x1xf32>
    %115 = arith.addf %113, %114 : vector<8x1xf32>
    %116 = math.rsqrt %115 : vector<8x1xf32>
    %117 = vector.broadcast %116 : vector<8x1xf32> to vector<8x32xf32>
    %118 = arith.mulf %108, %117 : vector<8x32xf32>
    %c0_37 = arith.constant 0 : index
    %c0_38 = arith.constant 0 : index
    %119 = vector.load %arg7[%c0_37, %c0_38] : memref<1x32xf32, #tpu.memory_space<vmem>>, vector<1x32xf32>
    %120 = vector.broadcast %119 : vector<1x32xf32> to vector<8x32xf32>
    %121 = arith.mulf %118, %120 : vector<8x32xf32>
    %c0_39 = arith.constant 0 : index
    %c0_40 = arith.constant 0 : index
    %122 = vector.load %arg8[%c0_39, %c0_40] : memref<1x32xf32, #tpu.memory_space<vmem>>, vector<1x32xf32>
    %123 = vector.broadcast %122 : vector<1x32xf32> to vector<8x32xf32>
    %124 = arith.addf %121, %123 : vector<8x32xf32>
    %125 = vector.shape_cast %124 : vector<8x32xf32> to vector<1x8x32xf32>
    %c0_41 = arith.constant 0 : index
    %c0_42 = arith.constant 0 : index
    %c0_43 = arith.constant 0 : index
    %126 = vector.load %arg9[%c0_41, %c0_42, %c0_43] : memref<1x8x32xf32, #tpu.memory_space<vmem>>, vector<1x8x32xf32>
    tpu.vector_store %arg9[%c0_41, %c0_42, %c0_43], %125 {strides = array<i32>} : memref<1x8x32xf32, #tpu.memory_space<vmem>>, vector<1x8x32xf32>,
    return
  }
  func.func @transform_0(%arg0: i32) -> (i32, i32, i32) {
    %c0_i32 = arith.constant 0 : i32
    %c0_i32_0 = arith.constant 0 : i32
    %c0_i32_1 = arith.constant 0 : i32
    return %arg0, %c0_i32, %c0_i32_0 : i32, i32, i32
  }
  func.func @transform_1(%arg0: i32) -> (i32, i32, i32) {
    %c0_i32 = arith.constant 0 : i32
    %c0_i32_0 = arith.constant 0 : i32
    %c0_i32_1 = arith.constant 0 : i32
    return %arg0, %c0_i32, %c0_i32_0 : i32, i32, i32
  }
  func.func @transform_2(%arg0: i32) -> (i32, i32) {
    %c0_i32 = arith.constant 0 : i32
    %c0_i32_0 = arith.constant 0 : i32
    %c0_i32_1 = arith.constant 0 : i32
    return %c0_i32, %c0_i32_0 : i32, i32
  }
  func.func @transform_3(%arg0: i32) -> (i32, i32) {
    %c0_i32 = arith.constant 0 : i32
    %c0_i32_0 = arith.constant 0 : i32
    %c0_i32_1 = arith.constant 0 : i32
    return %c0_i32, %c0_i32_0 : i32, i32
  }
  func.func @transform_4(%arg0: i32) -> (i32, i32) {
    %c0_i32 = arith.constant 0 : i32
    %c0_i32_0 = arith.constant 0 : i32
    %c0_i32_1 = arith.constant 0 : i32
    return %c0_i32, %c0_i32_0 : i32, i32
  }
  func.func @transform_5(%arg0: i32) -> (i32, i32) {
    %c0_i32 = arith.constant 0 : i32
    %c0_i32_0 = arith.constant 0 : i32
    %c0_i32_1 = arith.constant 0 : i32
    return %c0_i32, %c0_i32_0 : i32, i32
  }
  func.func @transform_6(%arg0: i32) -> (i32, i32) {
    %c0_i32 = arith.constant 0 : i32
    %c0_i32_0 = arith.constant 0 : i32
    %c0_i32_1 = arith.constant 0 : i32
    return %c0_i32, %c0_i32_0 : i32, i32
  }
  func.func @transform_7(%arg0: i32) -> (i32, i32) {
    %c0_i32 = arith.constant 0 : i32
    %c0_i32_0 = arith.constant 0 : i32
    %c0_i32_1 = arith.constant 0 : i32
    return %c0_i32, %c0_i32_0 : i32, i32
  }
  func.func @transform_8(%arg0: i32) -> (i32, i32, i32) {
    %c0_i32 = arith.constant 0 : i32
    %c0_i32_0 = arith.constant 0 : i32
    %c0_i32_1 = arith.constant 0 : i32
    return %arg0, %c0_i32, %c0_i32_0 : i32, i32, i32
  }
}

</mosaic_0001>

<llo_original>
// kernel: tpu_custom_call.1
$region0: #{tpu_custom_call.1}
  #allocation0 [shape = 'u32[]', space=smem, size = 0x4, offset = 0x4, fixed_abs, tag = 'smem constant byte address 0x4 - core index']
  #allocation1 [shape = 'u32[144,128]{1,0:T(1,128)}', space=vmem, size = 0x12000, scoped, tag = 'internal scratch']
  %s0 = inlined_call_operand.hbm [shape: f32[2,8,32], index: 0, kind: input, shape index: {}]
  %s1 = inlined_call_operand.hbm [shape: f32[2,1,8], index: 1, kind: input, shape index: {}]
  %s2 = inlined_call_operand.hbm [shape: bf16[32,96], index: 2, kind: input, shape index: {}]
  %s3 = inlined_call_operand.vmem [shape: f32[1,96], index: 3, kind: input, shape index: {}]
  %s4 = inlined_call_operand.hbm [shape: bf16[32,32], index: 4, kind: input, shape index: {}]
  %s5 = inlined_call_operand.vmem [shape: f32[1,32], index: 5, kind: input, shape index: {}]
  %s6 = inlined_call_operand.vmem [shape: f32[1,32], index: 6, kind: input, shape index: {}]
  %s7 = inlined_call_operand.vmem [shape: f32[1,32], index: 7, kind: input, shape index: {}]
  %s8 = inlined_call_operand.hbm [shape: f32[2,8,32], index: 8, kind: output, shape index: {}]
  %s9 = sld [smem:[#allocation0]]
  $region81: #{tpu_custom_call.1} parent=0
    _
  %s11 = ssub.s32 1, %s9
  %s12 = scalar_select 0, %s11, %s9
  $region1: #{tpu_custom_call.1} parent=0
    #allocation2 [shape = 'u8[8192]{0}', space=vmem, size = 0x2000, scoped, tag = 'input window, operand 0']
    #allocation3 [shape = 's32[2]{0}', space=sflag, size = 0x8, scoped, tag = 'scoped memory for tpu_custom_call.1']
    #allocation4 [shape = 's32[2]{0}', space=sflag, size = 0x8, scoped, tag = 'scoped memory for tpu_custom_call.1']
    #allocation5 [shape = 'u8[1024]{0}', space=vmem, size = 0x400, scoped, tag = 'input window, operand 1']
    #allocation6 [shape = 's32[2]{0}', space=sflag, size = 0x8, scoped, tag = 'scoped memory for tpu_custom_call.1']
    #allocation7 [shape = 'u8[8192]{0}', space=vmem, size = 0x2000, scoped, tag = 'input window, operand 2, single buffered']
    #allocation8 [shape = 'u8[8192]{0}', space=vmem, size = 0x2000, scoped, tag = 'input window, operand 4, single buffered']
    #allocation9 [shape = 's32[1]{0}', space=sflag, size = 0x4, scoped, tag = 'scoped memory for tpu_custom_call.1']
    #allocation10 [shape = 'u8[8192]{0}', space=vmem, size = 0x2000, scoped, tag = 'output window, operand 0']
    %13 = vsyncpa [#allocation3], 0
    %s14 = scalar_lea.sflag [#allocation3], 1
    %15 = vsyncpa %s14, 0
    %16 = vsyncpa [#allocation6], 0
    %s17 = scalar_lea.sflag [#allocation6], 1
    %18 = vsyncpa %s17, 0
    %19 = vsyncpa [#allocation9], 0
    %20 = vsyncpa [#allocation4], 0
    %s21 = scalar_lea.sflag [#allocation4], 1
    %22 = vsyncpa %s21, 0
    loop: start=0, step=1, limit=4
    $region2: #{tpu_custom_call.1} parent=1 // loop_pre_header
      _
    $region3: #{tpu_custom_call.1} parent=1 // loop_header
      %s24 = sphi 0, %s28
      %p25 = scmp.ge.s32.totalorder %s24, 4
      %s34 = sphi 0, %s36
      %s37 = sphi 0, %s34
      %s38 = sphi 0, %s37
      %s54 = sphi 0, %s38
      %s60 = sphi 0, %s62
      %s63 = sphi 0, %s60
      %s64 = sphi 0, %s63
      %s80 = sphi 0, %s64
      %s84 = sphi 0, %s84
      %s86 = sphi 0, %s84
      %s87 = sphi 0, %s86
      %s101 = sphi 0, %s87
      %s105 = sphi 0, %s105
      %s107 = sphi 0, %s105
      %s108 = sphi 0, %s107
      %s122 = sphi 0, %s108
      %s126 = sphi 0, %s126
      %s128 = sphi 0, %s126
      %s129 = sphi 0, %s128
      %s143 = sphi 0, %s129
      %s147 = sphi 0, %s147
      %s149 = sphi 0, %s147
      %s150 = sphi 0, %s149
      %s164 = sphi 0, %s150
      %s168 = sphi 0, %s168
      %s170 = sphi 0, %s168
      %s171 = sphi 0, %s170
      %s185 = sphi 0, %s171
      %s189 = sphi 0, %s189
      %s191 = sphi 0, %s189
      %s192 = sphi 0, %s191
      %s206 = sphi 0, %s192
      %s212 = sphi 0, %s214
      %s215 = sphi 0, %s212
      %s216 = sphi 0, %s215
      %s232 = sphi 0, %s216
    $region4: #{tpu_custom_call.1} parent=1 // loop_header_branch
      %27 = sbr.rel (%p25) target = $region8
    $region5: #{tpu_custom_call.1} parent=1 // loop_body
      %s29 = ssub.s32 %s24, 1
      %s30 = ssub.s32 %s24, 2
      %s31 = sadd.s32 %s24, 1
      %s32 = ssub.s32 %s24, %s31
      %p33 = scmp.eq.s32.totalorder %s32, 0
      %s35 = sadd.s32 %s34, 1
      %s36 = scalar_select %p33, %s34, %s35
      %p39 = pneg %p33
      %p40 = scmp.eq.s32.totalorder %s24, 1
      %p41 = por %p39, %p40
      %p42 = scmp.ne.s32.totalorder %s34, %s37
      %p43 = scmp.eq.s32.totalorder %s24, 0
      %p44 = por %p42, %p43
      %p45 = scmp.ne.s32.totalorder %s34, %s37
      %p46 = scmp.eq.s32.totalorder %s29, 1
      %p47 = por %p45, %p46
      %p48 = scmp.ne.s32.totalorder %s37, %s38
      %p49 = scmp.eq.s32.totalorder %s29, 0
      %p50 = por %p48, %p49
      %p51 = scmp.ne.s32.totalorder %s37, %s38
      %p52 = scmp.eq.s32.totalorder %s30, 1
      %p53 = por %p51, %p52
      %p55 = scmp.ne.s32.totalorder %s38, %s54
      %p56 = scmp.eq.s32.totalorder %s30, 0
      %p57 = por %p55, %p56
      %s58 = ssub.s32 %s24, %s31
      %p59 = scmp.eq.s32.totalorder %s58, 0
      %s61 = sadd.s32 %s60, 1
      %s62 = scalar_select %p59, %s60, %s61
      %p65 = pneg %p59
      %p66 = scmp.eq.s32.totalorder %s24, 1
      %p67 = por %p65, %p66
      %p68 = scmp.ne.s32.totalorder %s60, %s63
      %p69 = scmp.eq.s32.totalorder %s24, 0
      %p70 = por %p68, %p69
      %p71 = scmp.ne.s32.totalorder %s60, %s63
      %p72 = scmp.eq.s32.totalorder %s29, 1
      %p73 = por %p71, %p72
      %p74 = scmp.ne.s32.totalorder %s63, %s64
      %p75 = scmp.eq.s32.totalorder %s29, 0
      %p76 = por %p74, %p75
      %p77 = scmp.ne.s32.totalorder %s63, %s64
      %p78 = scmp.eq.s32.totalorder %s30, 1
      %p79 = por %p77, %p78
      %p81 = scmp.ne.s32.totalorder %s64, %s80
      %p82 = scmp.eq.s32.totalorder %s30, 0
      %p83 = por %p81, %p82
      %s85 = sadd.s32 %s84, 1
      %p88 = scmp.eq.s32.totalorder %s24, 1
      %p89 = scmp.ne.s32.totalorder %s84, %s86
      %p90 = scmp.eq.s32.totalorder %s24, 0
      %p91 = por %p89, %p90
      %p92 = scmp.ne.s32.totalorder %s84, %s86
      %p93 = scmp.eq.s32.totalorder %s29, 1
      %p94 = por %p92, %p93
      %p95 = scmp.ne.s32.totalorder %s86, %s87
      %p96 = scmp.eq.s32.totalorder %s29, 0
      %p97 = por %p95, %p96
      %p98 = scmp.ne.s32.totalorder %s86, %s87
      %p99 = scmp.eq.s32.totalorder %s30, 1
      %p100 = por %p98, %p99
      %p102 = scmp.ne.s32.totalorder %s87, %s101
      %p103 = scmp.eq.s32.totalorder %s30, 0
      %p104 = por %p102, %p103
      %s106 = sadd.s32 %s105, 1
      %p109 = scmp.eq.s32.totalorder %s24, 1
      %p110 = scmp.ne.s32.totalorder %s105, %s107
      %p111 = scmp.eq.s32.totalorder %s24, 0
      %p112 = por %p110, %p111
      %p113 = scmp.ne.s32.totalorder %s105, %s107
      %p114 = scmp.eq.s32.totalorder %s29, 1
      %p115 = por %p113, %p114
      %p116 = scmp.ne.s32.totalorder %s107, %s108
      %p117 = scmp.eq.s32.totalorder %s29, 0
      %p118 = por %p116, %p117
      %p119 = scmp.ne.s32.totalorder %s107, %s108
      %p120 = scmp.eq.s32.totalorder %s30, 1
      %p121 = por %p119, %p120
      %p123 = scmp.ne.s32.totalorder %s108, %s122
      %p124 = scmp.eq.s32.totalorder %s30, 0
      %p125 = por %p123, %p124
      %s127 = sadd.s32 %s126, 1
      %p130 = scmp.eq.s32.totalorder %s24, 1
      %p131 = scmp.ne.s32.totalorder %s126, %s128
      %p132 = scmp.eq.s32.totalorder %s24, 0
      %p133 = por %p131, %p132
      %p134 = scmp.ne.s32.totalorder %s126, %s128
      %p135 = scmp.eq.s32.totalorder %s29, 1
      %p136 = por %p134, %p135
      %p137 = scmp.ne.s32.totalorder %s128, %s129
      %p138 = scmp.eq.s32.totalorder %s29, 0
      %p139 = por %p137, %p138
      %p140 = scmp.ne.s32.totalorder %s128, %s129
      %p141 = scmp.eq.s32.totalorder %s30, 1
      %p142 = por %p140, %p141
      %p144 = scmp.ne.s32.totalorder %s129, %s143
      %p145 = scmp.eq.s32.totalorder %s30, 0
      %p146 = por %p144, %p145
      %s148 = sadd.s32 %s147, 1
      %p151 = scmp.eq.s32.totalorder %s24, 1
      %p152 = scmp.ne.s32.totalorder %s147, %s149
      %p153 = scmp.eq.s32.totalorder %s24, 0
      %p154 = por %p152, %p153
      %p155 = scmp.ne.s32.totalorder %s147, %s149
      %p156 = scmp.eq.s32.totalorder %s29, 1
      %p157 = por %p155, %p156
      %p158 = scmp.ne.s32.totalorder %s149, %s150
      %p159 = scmp.eq.s32.totalorder %s29, 0
      %p160 = por %p158, %p159
      %p161 = scmp.ne.s32.totalorder %s149, %s150
      %p162 = scmp.eq.s32.totalorder %s30, 1
      %p163 = por %p161, %p162
      %p165 = scmp.ne.s32.totalorder %s150, %s164
      %p166 = scmp.eq.s32.totalorder %s30, 0
      %p167 = por %p165, %p166
      %s169 = sadd.s32 %s168, 1
      %p172 = scmp.eq.s32.totalorder %s24, 1
      %p173 = scmp.ne.s32.totalorder %s168, %s170
      %p174 = scmp.eq.s32.totalorder %s24, 0
      %p175 = por %p173, %p174
      %p176 = scmp.ne.s32.totalorder %s168, %s170
      %p177 = scmp.eq.s32.totalorder %s29, 1
      %p178 = por %p176, %p177
      %p179 = scmp.ne.s32.totalorder %s170, %s171
      %p180 = scmp.eq.s32.totalorder %s29, 0
      %p181 = por %p179, %p180
      %p182 = scmp.ne.s32.totalorder %s170, %s171
      %p183 = scmp.eq.s32.totalorder %s30, 1
      %p184 = por %p182, %p183
      %p186 = scmp.ne.s32.totalorder %s171, %s185
      %p187 = scmp.eq.s32.totalorder %s30, 0
      %p188 = por %p186, %p187
      %s190 = sadd.s32 %s189, 1
      %p193 = scmp.eq.s32.totalorder %s24, 1
      %p194 = scmp.ne.s32.totalorder %s189, %s191
      %p195 = scmp.eq.s32.totalorder %s24, 0
      %p196 = por %p194, %p195
      %p197 = scmp.ne.s32.totalorder %s189, %s191
      %p198 = scmp.eq.s32.totalorder %s29, 1
      %p199 = por %p197, %p198
      %p200 = scmp.ne.s32.totalorder %s191, %s192
      %p201 = scmp.eq.s32.totalorder %s29, 0
      %p202 = por %p200, %p201
      %p203 = scmp.ne.s32.totalorder %s191, %s192
      %p204 = scmp.eq.s32.totalorder %s30, 1
      %p205 = por %p203, %p204
      %p207 = scmp.ne.s32.totalorder %s192, %s206
      %p208 = scmp.eq.s32.totalorder %s30, 0
      %p209 = por %p207, %p208
      %s210 = ssub.s32 %s24, %s31
      %p211 = scmp.eq.s32.totalorder %s210, 0
      %s213 = sadd.s32 %s212, 1
      %s214 = scalar_select %p211, %s212, %s213
      %p217 = pneg %p211
      %p218 = scmp.eq.s32.totalorder %s24, 1
      %p219 = por %p217, %p218
      %p220 = scmp.ne.s32.totalorder %s212, %s215
      %p221 = scmp.eq.s32.totalorder %s24, 0
      %p222 = por %p220, %p221
      %p223 = scmp.ne.s32.totalorder %s212, %s215
      %p224 = scmp.eq.s32.totalorder %s29, 1
      %p225 = por %p223, %p224
      %p226 = scmp.ne.s32.totalorder %s215, %s216
      %p227 = scmp.eq.s32.totalorder %s29, 0
      %p228 = por %p226, %p227
      %p229 = scmp.ne.s32.totalorder %s215, %s216
      %p230 = scmp.eq.s32.totalorder %s30, 1
      %p231 = por %p229, %p230
      %p233 = scmp.ne.s32.totalorder %s216, %s232
      %p234 = scmp.eq.s32.totalorder %s30, 0
      %p235 = por %p233, %p234
      %p236 = scmp.le.s32.totalorder 1, %s24
      %p237 = scmp.lt.s32.totalorder %s24, 3
      %p238 = pnand %p236, %p237
      %p239 = pneg %p238
      // Predicated region
      $region9: #{tpu_custom_call.1} parent=5 // pred_check
        _
      $region10: #{tpu_custom_call.1} parent=5 // pred_check_branch
        %241 = sbr.rel (%p238) target = $region12
      $region11: #{tpu_custom_call.1} parent=5 // pred_region
        %s242 = ssub.s32 %s24, 1
        // Predicated region
        $region13: #{tpu_custom_call.1} parent=11 // pred_check
          %p243 = pneg %p97
        $region14: #{tpu_custom_call.1} parent=11 // pred_check_branch
          %245 = sbr.rel (%p243) target = $region16
        $region15: #{tpu_custom_call.1} parent=11 // pred_region
          %s247 = ssub.s32 256, 256
          %248 = vsyncadd [#allocation6], %s247
          %s249 = sshll.u32 [#allocation7], 4
          %s250 = int_to_ptr.vmem [resolvable:$true] %s249
          %255 = dma.hbm_to_vmem [thread:$0]  %s2, 256, %s250, [#allocation6], 64, 64, 4
        $region16: #{tpu_custom_call.1} parent=11 // pred_fallthru
          _
        // Predicated region
        $region17: #{tpu_custom_call.1} parent=11 // pred_check
          %p256 = pneg %p118
        $region18: #{tpu_custom_call.1} parent=11 // pred_check_branch
          %258 = sbr.rel (%p256) target = $region20
        $region19: #{tpu_custom_call.1} parent=11 // pred_region
          _
        $region20: #{tpu_custom_call.1} parent=11 // pred_fallthru
          _
        // Predicated region
        $region21: #{tpu_custom_call.1} parent=11 // pred_check
          %p259 = pneg %p139
        $region22: #{tpu_custom_call.1} parent=11 // pred_check_branch
          %261 = sbr.rel (%p259) target = $region24
        $region23: #{tpu_custom_call.1} parent=11 // pred_region
          %s263 = ssub.s32 256, 256
          %264 = vsyncadd [#allocation9], %s263
          %s265 = sshll.u32 [#allocation8], 4
          %s266 = int_to_ptr.vmem [resolvable:$true] %s265
          %271 = dma.hbm_to_vmem [thread:$0]  %s4, 256, %s266, [#allocation9], 64, 64, 4
        $region24: #{tpu_custom_call.1} parent=11 // pred_fallthru
          _
        // Predicated region
        $region25: #{tpu_custom_call.1} parent=11 // pred_check
          %p272 = pneg %p160
        $region26: #{tpu_custom_call.1} parent=11 // pred_check_branch
          %274 = sbr.rel (%p272) target = $region28
        $region27: #{tpu_custom_call.1} parent=11 // pred_region
          _
        $region28: #{tpu_custom_call.1} parent=11 // pred_fallthru
          _
        // Predicated region
        $region29: #{tpu_custom_call.1} parent=11 // pred_check
          %p275 = pneg %p181
        $region30: #{tpu_custom_call.1} parent=11 // pred_check_branch
          %277 = sbr.rel (%p275) target = $region32
        $region31: #{tpu_custom_call.1} parent=11 // pred_region
          _
        $region32: #{tpu_custom_call.1} parent=11 // pred_fallthru
          _
        // Predicated region
        $region33: #{tpu_custom_call.1} parent=11 // pred_check
          %p278 = pneg %p202
        $region34: #{tpu_custom_call.1} parent=11 // pred_check_branch
          %280 = sbr.rel (%p278) target = $region36
        $region35: #{tpu_custom_call.1} parent=11 // pred_region
          _
        $region36: #{tpu_custom_call.1} parent=11 // pred_fallthru
          _
      $region12: #{tpu_custom_call.1} parent=5 // pred_fallthru
        _
      %p281 = scmp.lt.s32.totalorder %s24, 2
      // Predicated region
      $region37: #{tpu_custom_call.1} parent=5 // pred_check
        %p282 = pneg %p281
      $region38: #{tpu_custom_call.1} parent=5 // pred_check_branch
        %284 = sbr.rel (%p282) target = $region40
      $region39: #{tpu_custom_call.1} parent=5 // pred_region
        // Predicated region
        $region41: #{tpu_custom_call.1} parent=39 // pred_check
          %p285 = pneg %p44
        $region42: #{tpu_custom_call.1} parent=39 // pred_check_branch
          %287 = sbr.rel (%p285) target = $region44
        $region43: #{tpu_custom_call.1} parent=39 // pred_region
          %s288 = sand.u32 %s34, 1
          %s289 = scalar_lea.sflag [#allocation3], %s288
          %s290 = sand.u32 %s34, 1
          %s291 = smul.addr %s290, 8
          %s292 = scalar_lea.vmem [#allocation2], %s291
          %s294 = ssub.s32 128, 128
          %295 = vsyncadd %s289, %s294
          %s296 = smul.addr %s24, 128
          %s297 = scalar_lea.hbm %s0, %s296
          %s299 = sshll.u32 %s292, 4
          %s300 = int_to_ptr.vmem [resolvable:$true] %s299
          %302 = dma.hbm_to_vmem [thread:$0]  %s297, 128, %s300, %s289
        $region44: #{tpu_custom_call.1} parent=39 // pred_fallthru
          _
        // Predicated region
        $region45: #{tpu_custom_call.1} parent=39 // pred_check
          %p303 = pneg %p70
        $region46: #{tpu_custom_call.1} parent=39 // pred_check_branch
          %305 = sbr.rel (%p303) target = $region48
        $region47: #{tpu_custom_call.1} parent=39 // pred_region
          %s306 = sand.u32 %s24, 1
          %s307 = scalar_lea.sflag [#allocation6], %s306
          %s308 = sand.u32 %s60, 1
          %s309 = scalar_lea.vmem [#allocation5], %s308
          %s311 = ssub.s32 16, 16
          %312 = vsyncadd %s307, %s311
          %s313 = smul.addr %s24, 16
          %s314 = scalar_lea.hbm %s1, %s313
          %s316 = sshll.u32 %s309, 4
          %s317 = int_to_ptr.vmem [resolvable:$true] %s316
          %319 = dma.hbm_to_vmem [thread:$0]  %s314, 16, %s317, %s307
        $region48: #{tpu_custom_call.1} parent=39 // pred_fallthru
          _
      $region40: #{tpu_custom_call.1} parent=5 // pred_fallthru
        _
      %p320 = scmp.le.s32.totalorder 1, %s24
      %p321 = scmp.lt.s32.totalorder %s24, 3
      %p322 = pnand %p320, %p321
      %p323 = pneg %p322
      // Predicated region
      $region49: #{tpu_custom_call.1} parent=5 // pred_check
        _
      $region50: #{tpu_custom_call.1} parent=5 // pred_check_branch
        %325 = sbr.rel (%p322) target = $region52
      $region51: #{tpu_custom_call.1} parent=5 // pred_region
        %s326 = ssub.s32 %s24, 1
        %s327 = sand.u32 %s37, 1
        %s328 = scalar_lea.sflag [#allocation3], %s327
        %s329 = sand.u32 %s37, 1
        %s330 = smul.addr %s329, 8
        %s331 = scalar_lea.vmem [#allocation2], %s330
        // Predicated region
        $region53: #{tpu_custom_call.1} parent=51 // pred_check
          %p332 = pneg %p50
        $region54: #{tpu_custom_call.1} parent=51 // pred_check_branch
          %334 = sbr.rel (%p332) target = $region56
        $region55: #{tpu_custom_call.1} parent=51 // pred_region
          %335 = dma.done %s328, 128
        $region56: #{tpu_custom_call.1} parent=51 // pred_fallthru
          _
        %s336 = sand.u32 %s29, 1
        %s337 = scalar_lea.sflag [#allocation6], %s336
        %s338 = sand.u32 %s63, 1
        %s339 = scalar_lea.vmem [#allocation5], %s338
        // Predicated region
        $region57: #{tpu_custom_call.1} parent=51 // pred_check
          %p340 = pneg %p76
        $region58: #{tpu_custom_call.1} parent=51 // pred_check_branch
          %342 = sbr.rel (%p340) target = $region60
        $region59: #{tpu_custom_call.1} parent=51 // pred_region
          %343 = dma.done %s337, 16
        $region60: #{tpu_custom_call.1} parent=51 // pred_fallthru
          _
        // Predicated region
        $region61: #{tpu_custom_call.1} parent=51 // pred_check
          %p344 = pneg %p97
        $region62: #{tpu_custom_call.1} parent=51 // pred_check_branch
          %346 = sbr.rel (%p344) target = $region64
        $region63: #{tpu_custom_call.1} parent=51 // pred_region
          %347 = dma.done [#allocation6], 256
        $region64: #{tpu_custom_call.1} parent=51 // pred_fallthru
          _
        // Predicated region
        $region65: #{tpu_custom_call.1} parent=51 // pred_check
          %p348 = pneg %p139
        $region66: #{tpu_custom_call.1} parent=51 // pred_check_branch
          %350 = sbr.rel (%p348) target = $region68
        $region67: #{tpu_custom_call.1} parent=51 // pred_region
          %351 = dma.done [#allocation9], 256
        $region68: #{tpu_custom_call.1} parent=51 // pred_fallthru
          _
        %s352 = sand.u32 %s37, 1
        %s353 = scalar_lea.sflag [#allocation3], %s352
        %s354 = sand.u32 %s37, 1
        %s355 = smul.addr %s354, 8
        %s356 = scalar_lea.vmem [#allocation2], %s355
        %p357 = pneg %p50
        %p358 = pneg %p47
        %s359 = sand.u32 %s29, 1
        %s360 = scalar_lea.sflag [#allocation6], %s359
        %s361 = sand.u32 %s63, 1
        %s362 = scalar_lea.vmem [#allocation5], %s361
        %p363 = pneg %p76
        %p364 = pneg %p73
        %p365 = pneg %p97
        %p366 = pneg %p94
        %p367 = pneg %p118
        %p368 = pneg %p115
        %p369 = pneg %p139
        %p370 = pneg %p136
        %p371 = pneg %p160
        %p372 = pneg %p157
        %p373 = pneg %p181
        %p374 = pneg %p178
        %p375 = pneg %p202
        %p376 = pneg %p199
        %p377 = pneg %p228
        %p378 = pneg %p225
        %s379 = sand.u32 %s215, 1
        %s380 = scalar_lea.sflag [#allocation4], %s379
        %s381 = sand.u32 %s215, 1
        %s382 = smul.addr %s381, 8
        %s383 = scalar_lea.vmem [#allocation10], %s382
        %v385 = vld [vmem:[%s331] sm:$0xff]
        %v386 = vpack.c.bf16 %v385, %v385
        %v387 = vld [vmem:[#allocation7] sm:$0xf]
        %v388 = vld [vmem:[#allocation7 + $0x4] sm:$0xf]
        %v389 = vld [vmem:[#allocation7 + $0x8] sm:$0xf]
        %v390 = vld [vmem:[#allocation7 + $0xc] sm:$0xf]
        %v391 = vld [vmem:[%s3] sm:$0x1]
        %v393 = vlaneseq
        %v394 = vshrl.u32 %v393, 7
        %v395 = vsub.s32 0, %v394
        %v396 = vrot.slane %v391, %v395
        %v402 = vunpack.c.l.b16 %v387
        %v403 = vunpack.c.l.b16 %v388
        %v404 = vunpack.c.l.b16 %v389
        %v405 = vunpack.c.l.b16 %v390
        %v406 = vpack.c.b16 %v403, %v402
        %v407 = vpack.c.b16 %v405, %v404
        %vm410 = vcmask 261120
        %v412 = vsel %vm410, %v386, 0
        %414 = vmatprep.subr.bf16.mxu0 0
        %415 = vmatpush1.bf16.msra.mxu0 0
        %416 = vmatprep.subr.bf16.mxu0 0
        %417 = vmatpush1.bf16.msra.mxu0 0
        %418 = vmatprep.subr.bf16.mxu0 0
        %419 = vmatpush1.bf16.msra.mxu0 0
        %420 = vmatprep.subr.bf16.mxu0 0
        %421 = vmatpush1.bf16.msra.mxu0 0
        %422 = vmatprep.subr.bf16.mxu0 0
        %423 = vmatpush1.bf16.msra.mxu0 0
        %424 = vmatprep.subr.bf16.mxu0 0
        %425 = vmatpush1.bf16.msra.mxu0 0
        %426 = vmatprep.subr.bf16.mxu0 0
        %427 = vmatpush1.bf16.msra.mxu0 %v407
        %428 = vmatprep.subr.bf16.mxu0 0
        %429 = vmatpush1.bf16.msra.mxu0 %v406
        %430 = vmatprep.subr.bf16.mxu0 0
        %431 = vmatpush2.bf16.msra.mxu0 0
        %432 = vmatprep.subr.bf16.mxu0 0
        %433 = vmatpush2.bf16.msra.mxu0 0
        %434 = vmatprep.subr.bf16.mxu0 0
        %435 = vmatpush2.bf16.msra.mxu0 0
        %436 = vmatprep.subr.bf16.mxu0 0
        %437 = vmatpush2.bf16.msra.mxu0 0
        %438 = vmatprep.subr.bf16.mxu0 0
        %439 = vmatpush2.bf16.msra.mxu0 0
        %440 = vmatprep.subr.bf16.mxu0 0
        %441 = vmatpush2.bf16.msra.mxu0 0
        %442 = vmatprep.subr.bf16.mxu0 0
        %443 = vmatpush2.bf16.msra.mxu0 0
        %444 = vmatprep.subr.bf16.mxu0 0
        %445 = vmatpush2.bf16.msra.mxu0 0
        %446 = vmatprep.mubr.bf16.mxu0 0
        %447 = vmatmul.mubr.bf16.gmra.mxu0 %v412
        %v448 = vpop.f32.mrf.mxu0
        %v449 = vadd.f32 %v396, %v448
        %v450 = vpop.f32.mrf.mxu0
        %v451 = vpop.f32.mrf.mxu0
        %v452 = vpop.f32.mrf.mxu0
        %453 = vdwg.mxu0
        %v454 = vpack.c.bf16 %v449, %v449
        %v455 = vld [vmem:[%s339] sm:$0x1]
        %vm456 = vcmp.eq.f32.partialorder %v455, 0.0
        %v457 = vsel %vm456, 1, 0
        %v458 = vcvt.s32.f32 %v457
        %v459 = vmul.f32 %v458, -1e+09
        %v461 = vlaneseq
        %v462 = vshrl.u32 %v461, 7
        %v463 = vsub.s32 0, %v462
        %v464 = vrot.slane %v459, %v463
        %467 = vrot.lane.b32.xlu0 %v454, 96
        %v468 = vpop.permute.xlu0 %467
        %vm469 = vcmask 64512
        %v471 = vsel %vm469, %v454, 0
        %v474 = vsel %vm469, %v468, 0
        %476 = vmatprep.subr.bf16.mxu0 0
        %477 = vmatpush1.bf16.xpose.msra.mxu0 0
        %478 = vmatprep.subr.bf16.mxu0 0
        %479 = vmatpush1.bf16.xpose.msra.mxu0 0
        %480 = vmatprep.subr.bf16.mxu0 0
        %481 = vmatpush1.bf16.xpose.msra.mxu0 0
        %482 = vmatprep.subr.bf16.mxu0 0
        %483 = vmatpush1.bf16.xpose.msra.mxu0 0
        %484 = vmatprep.subr.bf16.mxu0 0
        %485 = vmatpush1.bf16.xpose.msra.mxu0 0
        %486 = vmatprep.subr.bf16.mxu0 0
        %487 = vmatpush1.bf16.xpose.msra.mxu0 0
        %488 = vmatprep.subr.bf16.mxu0 0
        %489 = vmatpush1.bf16.xpose.msra.mxu0 0
        %490 = vmatprep.subr.bf16.mxu0 0
        %491 = vmatpush1.bf16.xpose.msra.mxu0 %v474
        %492 = vmatprep.subr.bf16.mxu0 0
        %493 = vmatpush2.bf16.xpose.msra.mxu0 0
        %494 = vmatprep.subr.bf16.mxu0 0
        %495 = vmatpush2.bf16.xpose.msra.mxu0 0
        %496 = vmatprep.subr.bf16.mxu0 0
        %497 = vmatpush2.bf16.xpose.msra.mxu0 0
        %498 = vmatprep.subr.bf16.mxu0 0
        %499 = vmatpush2.bf16.xpose.msra.mxu0 0
        %500 = vmatprep.subr.bf16.mxu0 0
        %501 = vmatpush2.bf16.xpose.msra.mxu0 0
        %502 = vmatprep.subr.bf16.mxu0 0
        %503 = vmatpush2.bf16.xpose.msra.mxu0 0
        %504 = vmatprep.subr.bf16.mxu0 0
        %505 = vmatpush2.bf16.xpose.msra.mxu0 0
        %506 = vmatprep.subr.bf16.mxu0 0
        %507 = vmatpush2.bf16.xpose.msra.mxu0 0
        %508 = vmatprep.mubr.bf16.mxu0 0
        %509 = vmatmul.mubr.bf16.gmra.mxu0 %v471
        %v510 = vpop.f32.mrf.mxu0
        %v511 = vadd.f32 %v464, %v510
        %v512 = vpop.f32.mrf.mxu0
        %v513 = vpop.f32.mrf.mxu0
        %v514 = vpop.f32.mrf.mxu0
        %515 = vdwg.mxu0
        %v516 = vsel %vm469, %v511, -inf
        %517 = vmax.xlane.f32.xlu0 %v516
        %v518 = vpop.xlane.xlu0 %517
        %v519 = vsub.f32 %v511, %v518
        %v520 = vmul.f32 %v519, 1.442695
        %v521 = vpow.pop %v520
        %v522 = vsel %vm469, %v521, 0.0
        %523 = vadd.xlane.f32.xlu0 %v522
        %v524 = vpop.xlane.xlu0 %523
        %v525 = vrcp.pop %v524
        %v526 = vmul.f32 %v521, %v525
        %v527 = vpack.c.bf16 %v526, %v526
        %528 = vrot.lane.b32.xlu0 %v454, 64
        %v529 = vpop.permute.xlu0 %528
        %v531 = vsel %vm469, %v527, 0
        %vm533 = vcmask 1043456
        %v535 = vsel %vm533, %v529, 0
        %537 = vmatprep.subr.bf16.mxu0 0
        %538 = vmatpush1.bf16.msra.mxu0 0
        %539 = vmatprep.subr.bf16.mxu0 0
        %540 = vmatpush1.bf16.msra.mxu0 0
        %541 = vmatprep.subr.bf16.mxu0 0
        %542 = vmatpush1.bf16.msra.mxu0 0
        %543 = vmatprep.subr.bf16.mxu0 0
        %544 = vmatpush1.bf16.msra.mxu0 0
        %545 = vmatprep.subr.bf16.mxu0 0
        %546 = vmatpush1.bf16.msra.mxu0 0
        %547 = vmatprep.subr.bf16.mxu0 0
        %548 = vmatpush1.bf16.msra.mxu0 0
        %549 = vmatprep.subr.bf16.mxu0 0
        %550 = vmatpush1.bf16.msra.mxu0 0
        %551 = vmatprep.subr.bf16.mxu0 0
        %552 = vmatpush1.bf16.msra.mxu0 %v535
        %553 = vmatprep.subr.bf16.mxu0 0
        %554 = vmatpush2.bf16.msra.mxu0 0
        %555 = vmatprep.subr.bf16.mxu0 0
        %556 = vmatpush2.bf16.msra.mxu0 0
        %557 = vmatprep.subr.bf16.mxu0 0
        %558 = vmatpush2.bf16.msra.mxu0 0
        %559 = vmatprep.subr.bf16.mxu0 0
        %560 = vmatpush2.bf16.msra.mxu0 0
        %561 = vmatprep.subr.bf16.mxu0 0
        %562 = vmatpush2.bf16.msra.mxu0 0
        %563 = vmatprep.subr.bf16.mxu0 0
        %564 = vmatpush2.bf16.msra.mxu0 0
        %565 = vmatprep.subr.bf16.mxu0 0
        %566 = vmatpush2.bf16.msra.mxu0 0
        %567 = vmatprep.subr.bf16.mxu0 0
        %568 = vmatpush2.bf16.msra.mxu0 0
        %569 = vmatprep.mubr.bf16.mxu0 0
        %570 = vmatmul.mubr.bf16.gmra.mxu0 %v531
        %v571 = vpop.f32.mrf.mxu0
        %v572 = vadd.f32 0.0, %v571
        %v573 = vpop.f32.mrf.mxu0
        %v574 = vpop.f32.mrf.mxu0
        %v575 = vpop.f32.mrf.mxu0
        %576 = vdwg.mxu0
        %577 = vrot.lane.b32.xlu0 %v454, 120
        %v578 = vpop.permute.xlu0 %577
        %579 = vrot.lane.b32.xlu0 %v454, 88
        %v580 = vpop.permute.xlu0 %579
        %v582 = vsel %vm469, %v578, 0
        %v585 = vsel %vm469, %v580, 0
        %587 = vmatprep.subr.bf16.mxu0 0
        %588 = vmatpush1.bf16.xpose.msra.mxu0 0
        %589 = vmatprep.subr.bf16.mxu0 0
        %590 = vmatpush1.bf16.xpose.msra.mxu0 0
        %591 = vmatprep.subr.bf16.mxu0 0
        %592 = vmatpush1.bf16.xpose.msra.mxu0 0
        %593 = vmatprep.subr.bf16.mxu0 0
        %594 = vmatpush1.bf16.xpose.msra.mxu0 0
        %595 = vmatprep.subr.bf16.mxu0 0
        %596 = vmatpush1.bf16.xpose.msra.mxu0 0
        %597 = vmatprep.subr.bf16.mxu0 0
        %598 = vmatpush1.bf16.xpose.msra.mxu0 0
        %599 = vmatprep.subr.bf16.mxu0 0
        %600 = vmatpush1.bf16.xpose.msra.mxu0 0
        %601 = vmatprep.subr.bf16.mxu0 0
        %602 = vmatpush1.bf16.xpose.msra.mxu0 %v585
        %603 = vmatprep.subr.bf16.mxu0 0
        %604 = vmatpush2.bf16.xpose.msra.mxu0 0
        %605 = vmatprep.subr.bf16.mxu0 0
        %606 = vmatpush2.bf16.xpose.msra.mxu0 0
        %607 = vmatprep.subr.bf16.mxu0 0
        %608 = vmatpush2.bf16.xpose.msra.mxu0 0
        %609 = vmatprep.subr.bf16.mxu0 0
        %610 = vmatpush2.bf16.xpose.msra.mxu0 0
        %611 = vmatprep.subr.bf16.mxu0 0
        %612 = vmatpush2.bf16.xpose.msra.mxu0 0
        %613 = vmatprep.subr.bf16.mxu0 0
        %614 = vmatpush2.bf16.xpose.msra.mxu0 0
        %615 = vmatprep.subr.bf16.mxu0 0
        %616 = vmatpush2.bf16.xpose.msra.mxu0 0
        %617 = vmatprep.subr.bf16.mxu0 0
        %618 = vmatpush2.bf16.xpose.msra.mxu0 0
        %619 = vmatprep.mubr.bf16.mxu0 0
        %620 = vmatmul.mubr.bf16.gmra.mxu0 %v582
        %v621 = vpop.f32.mrf.mxu0
        %v622 = vadd.f32 %v464, %v621
        %v623 = vpop.f32.mrf.mxu0
        %v624 = vpop.f32.mrf.mxu0
        %v625 = vpop.f32.mrf.mxu0
        %626 = vdwg.mxu0
        %v627 = vsel %vm469, %v622, -inf
        %628 = vmax.xlane.f32.xlu0 %v627
        %v629 = vpop.xlane.xlu0 %628
        %v630 = vsub.f32 %v622, %v629
        %v631 = vmul.f32 %v630, 1.442695
        %v632 = vpow.pop %v631
        %v633 = vsel %vm469, %v632, 0.0
        %634 = vadd.xlane.f32.xlu0 %v633
        %v635 = vpop.xlane.xlu0 %634
        %v636 = vrcp.pop %v635
        %v637 = vmul.f32 %v632, %v636
        %v638 = vpack.c.bf16 %v637, %v637
        %639 = vrot.lane.b32.xlu0 %v454, 56
        %v640 = vpop.permute.xlu0 %639
        %v642 = vsel %vm469, %v638, 0
        %v645 = vsel %vm533, %v640, 0
        %647 = vmatprep.subr.bf16.mxu0 0
        %648 = vmatpush1.bf16.msra.mxu0 0
        %649 = vmatprep.subr.bf16.mxu0 0
        %650 = vmatpush1.bf16.msra.mxu0 0
        %651 = vmatprep.subr.bf16.mxu0 0
        %652 = vmatpush1.bf16.msra.mxu0 0
        %653 = vmatprep.subr.bf16.mxu0 0
        %654 = vmatpush1.bf16.msra.mxu0 0
        %655 = vmatprep.subr.bf16.mxu0 0
        %656 = vmatpush1.bf16.msra.mxu0 0
        %657 = vmatprep.subr.bf16.mxu0 0
        %658 = vmatpush1.bf16.msra.mxu0 0
        %659 = vmatprep.subr.bf16.mxu0 0
        %660 = vmatpush1.bf16.msra.mxu0 0
        %661 = vmatprep.subr.bf16.mxu0 0
        %662 = vmatpush1.bf16.msra.mxu0 %v645
        %663 = vmatprep.subr.bf16.mxu0 0
        %664 = vmatpush2.bf16.msra.mxu0 0
        %665 = vmatprep.subr.bf16.mxu0 0
        %666 = vmatpush2.bf16.msra.mxu0 0
        %667 = vmatprep.subr.bf16.mxu0 0
        %668 = vmatpush2.bf16.msra.mxu0 0
        %669 = vmatprep.subr.bf16.mxu0 0
        %670 = vmatpush2.bf16.msra.mxu0 0
        %671 = vmatprep.subr.bf16.mxu0 0
        %672 = vmatpush2.bf16.msra.mxu0 0
        %673 = vmatprep.subr.bf16.mxu0 0
        %674 = vmatpush2.bf16.msra.mxu0 0
        %675 = vmatprep.subr.bf16.mxu0 0
        %676 = vmatpush2.bf16.msra.mxu0 0
        %677 = vmatprep.subr.bf16.mxu0 0
        %678 = vmatpush2.bf16.msra.mxu0 0
        %679 = vmatprep.mubr.bf16.mxu0 0
        %680 = vmatmul.mubr.bf16.gmra.mxu0 %v642
        %v681 = vpop.f32.mrf.mxu0
        %v682 = vadd.f32 0.0, %v681
        %v683 = vpop.f32.mrf.mxu0
        %v684 = vpop.f32.mrf.mxu0
        %v685 = vpop.f32.mrf.mxu0
        %686 = vdwg.mxu0
        %687 = vrot.lane.b32.xlu0 %v454, 112
        %v688 = vpop.permute.xlu0 %687
        %689 = vrot.lane.b32.xlu0 %v454, 80
        %v690 = vpop.permute.xlu0 %689
        %v692 = vsel %vm469, %v688, 0
        %v695 = vsel %vm469, %v690, 0
        %697 = vmatprep.subr.bf16.mxu0 0
        %698 = vmatpush1.bf16.xpose.msra.mxu0 0
        %699 = vmatprep.subr.bf16.mxu0 0
        %700 = vmatpush1.bf16.xpose.msra.mxu0 0
        %701 = vmatprep.subr.bf16.mxu0 0
        %702 = vmatpush1.bf16.xpose.msra.mxu0 0
        %703 = vmatprep.subr.bf16.mxu0 0
        %704 = vmatpush1.bf16.xpose.msra.mxu0 0
        %705 = vmatprep.subr.bf16.mxu0 0
        %706 = vmatpush1.bf16.xpose.msra.mxu0 0
        %707 = vmatprep.subr.bf16.mxu0 0
        %708 = vmatpush1.bf16.xpose.msra.mxu0 0
        %709 = vmatprep.subr.bf16.mxu0 0
        %710 = vmatpush1.bf16.xpose.msra.mxu0 0
        %711 = vmatprep.subr.bf16.mxu0 0
        %712 = vmatpush1.bf16.xpose.msra.mxu0 %v695
        %713 = vmatprep.subr.bf16.mxu0 0
        %714 = vmatpush2.bf16.xpose.msra.mxu0 0
        %715 = vmatprep.subr.bf16.mxu0 0
        %716 = vmatpush2.bf16.xpose.msra.mxu0 0
        %717 = vmatprep.subr.bf16.mxu0 0
        %718 = vmatpush2.bf16.xpose.msra.mxu0 0
        %719 = vmatprep.subr.bf16.mxu0 0
        %720 = vmatpush2.bf16.xpose.msra.mxu0 0
        %721 = vmatprep.subr.bf16.mxu0 0
        %722 = vmatpush2.bf16.xpose.msra.mxu0 0
        %723 = vmatprep.subr.bf16.mxu0 0
        %724 = vmatpush2.bf16.xpose.msra.mxu0 0
        %725 = vmatprep.subr.bf16.mxu0 0
        %726 = vmatpush2.bf16.xpose.msra.mxu0 0
        %727 = vmatprep.subr.bf16.mxu0 0
        %728 = vmatpush2.bf16.xpose.msra.mxu0 0
        %729 = vmatprep.mubr.bf16.mxu0 0
        %730 = vmatmul.mubr.bf16.gmra.mxu0 %v692
        %v731 = vpop.f32.mrf.mxu0
        %v732 = vadd.f32 %v464, %v731
        %v733 = vpop.f32.mrf.mxu0
        %v734 = vpop.f32.mrf.mxu0
        %v735 = vpop.f32.mrf.mxu0
        %736 = vdwg.mxu0
        %v737 = vsel %vm469, %v732, -inf
        %738 = vmax.xlane.f32.xlu0 %v737
        %v739 = vpop.xlane.xlu0 %738
        %v740 = vsub.f32 %v732, %v739
        %v741 = vmul.f32 %v740, 1.442695
        %v742 = vpow.pop %v741
        %v743 = vsel %vm469, %v742, 0.0
        %744 = vadd.xlane.f32.xlu0 %v743
        %v745 = vpop.xlane.xlu0 %744
        %v746 = vrcp.pop %v745
        %v747 = vmul.f32 %v742, %v746
        %v748 = vpack.c.bf16 %v747, %v747
        %749 = vrot.lane.b32.xlu0 %v454, 48
        %v750 = vpop.permute.xlu0 %749
        %v752 = vsel %vm469, %v748, 0
        %v755 = vsel %vm533, %v750, 0
        %757 = vmatprep.subr.bf16.mxu0 0
        %758 = vmatpush1.bf16.msra.mxu0 0
        %759 = vmatprep.subr.bf16.mxu0 0
        %760 = vmatpush1.bf16.msra.mxu0 0
        %761 = vmatprep.subr.bf16.mxu0 0
        %762 = vmatpush1.bf16.msra.mxu0 0
        %763 = vmatprep.subr.bf16.mxu0 0
        %764 = vmatpush1.bf16.msra.mxu0 0
        %765 = vmatprep.subr.bf16.mxu0 0
        %766 = vmatpush1.bf16.msra.mxu0 0
        %767 = vmatprep.subr.bf16.mxu0 0
        %768 = vmatpush1.bf16.msra.mxu0 0
        %769 = vmatprep.subr.bf16.mxu0 0
        %770 = vmatpush1.bf16.msra.mxu0 0
        %771 = vmatprep.subr.bf16.mxu0 0
        %772 = vmatpush1.bf16.msra.mxu0 %v755
        %773 = vmatprep.subr.bf16.mxu0 0
        %774 = vmatpush2.bf16.msra.mxu0 0
        %775 = vmatprep.subr.bf16.mxu0 0
        %776 = vmatpush2.bf16.msra.mxu0 0
        %777 = vmatprep.subr.bf16.mxu0 0
        %778 = vmatpush2.bf16.msra.mxu0 0
        %779 = vmatprep.subr.bf16.mxu0 0
        %780 = vmatpush2.bf16.msra.mxu0 0
        %781 = vmatprep.subr.bf16.mxu0 0
        %782 = vmatpush2.bf16.msra.mxu0 0
        %783 = vmatprep.subr.bf16.mxu0 0
        %784 = vmatpush2.bf16.msra.mxu0 0
        %785 = vmatprep.subr.bf16.mxu0 0
        %786 = vmatpush2.bf16.msra.mxu0 0
        %787 = vmatprep.subr.bf16.mxu0 0
        %788 = vmatpush2.bf16.msra.mxu0 0
        %789 = vmatprep.mubr.bf16.mxu0 0
        %790 = vmatmul.mubr.bf16.gmra.mxu0 %v752
        %v791 = vpop.f32.mrf.mxu0
        %v792 = vadd.f32 0.0, %v791
        %v793 = vpop.f32.mrf.mxu0
        %v794 = vpop.f32.mrf.mxu0
        %v795 = vpop.f32.mrf.mxu0
        %796 = vdwg.mxu0
        %797 = vrot.lane.b32.xlu0 %v454, 104
        %v798 = vpop.permute.xlu0 %797
        %799 = vrot.lane.b32.xlu0 %v454, 72
        %v800 = vpop.permute.xlu0 %799
        %v802 = vsel %vm469, %v798, 0
        %v805 = vsel %vm469, %v800, 0
        %807 = vmatprep.subr.bf16.mxu0 0
        %808 = vmatpush1.bf16.xpose.msra.mxu0 0
        %809 = vmatprep.subr.bf16.mxu0 0
        %810 = vmatpush1.bf16.xpose.msra.mxu0 0
        %811 = vmatprep.subr.bf16.mxu0 0
        %812 = vmatpush1.bf16.xpose.msra.mxu0 0
        %813 = vmatprep.subr.bf16.mxu0 0
        %814 = vmatpush1.bf16.xpose.msra.mxu0 0
        %815 = vmatprep.subr.bf16.mxu0 0
        %816 = vmatpush1.bf16.xpose.msra.mxu0 0
        %817 = vmatprep.subr.bf16.mxu0 0
        %818 = vmatpush1.bf16.xpose.msra.mxu0 0
        %819 = vmatprep.subr.bf16.mxu0 0
        %820 = vmatpush1.bf16.xpose.msra.mxu0 0
        %821 = vmatprep.subr.bf16.mxu0 0
        %822 = vmatpush1.bf16.xpose.msra.mxu0 %v805
        %823 = vmatprep.subr.bf16.mxu0 0
        %824 = vmatpush2.bf16.xpose.msra.mxu0 0
        %825 = vmatprep.subr.bf16.mxu0 0
        %826 = vmatpush2.bf16.xpose.msra.mxu0 0
        %827 = vmatprep.subr.bf16.mxu0 0
        %828 = vmatpush2.bf16.xpose.msra.mxu0 0
        %829 = vmatprep.subr.bf16.mxu0 0
        %830 = vmatpush2.bf16.xpose.msra.mxu0 0
        %831 = vmatprep.subr.bf16.mxu0 0
        %832 = vmatpush2.bf16.xpose.msra.mxu0 0
        %833 = vmatprep.subr.bf16.mxu0 0
        %834 = vmatpush2.bf16.xpose.msra.mxu0 0
        %835 = vmatprep.subr.bf16.mxu0 0
        %836 = vmatpush2.bf16.xpose.msra.mxu0 0
        %837 = vmatprep.subr.bf16.mxu0 0
        %838 = vmatpush2.bf16.xpose.msra.mxu0 0
        %839 = vmatprep.mubr.bf16.mxu0 0
        %840 = vmatmul.mubr.bf16.gmra.mxu0 %v802
        %v841 = vpop.f32.mrf.mxu0
        %v842 = vadd.f32 %v464, %v841
        %v843 = vpop.f32.mrf.mxu0
        %v844 = vpop.f32.mrf.mxu0
        %v845 = vpop.f32.mrf.mxu0
        %846 = vdwg.mxu0
        %v847 = vsel %vm469, %v842, -inf
        %848 = vmax.xlane.f32.xlu0 %v847
        %v849 = vpop.xlane.xlu0 %848
        %v850 = vsub.f32 %v842, %v849
        %v851 = vmul.f32 %v850, 1.442695
        %v852 = vpow.pop %v851
        %v853 = vsel %vm469, %v852, 0.0
        %854 = vadd.xlane.f32.xlu0 %v853
        %v855 = vpop.xlane.xlu0 %854
        %v856 = vrcp.pop %v855
        %v857 = vmul.f32 %v852, %v856
        %v858 = vpack.c.bf16 %v857, %v857
        %859 = vrot.lane.b32.xlu0 %v454, 40
        %v860 = vpop.permute.xlu0 %859
        %v862 = vsel %vm469, %v858, 0
        %v865 = vsel %vm533, %v860, 0
        %867 = vmatprep.subr.bf16.mxu0 0
        %868 = vmatpush1.bf16.msra.mxu0 0
        %869 = vmatprep.subr.bf16.mxu0 0
        %870 = vmatpush1.bf16.msra.mxu0 0
        %871 = vmatprep.subr.bf16.mxu0 0
        %872 = vmatpush1.bf16.msra.mxu0 0
        %873 = vmatprep.subr.bf16.mxu0 0
        %874 = vmatpush1.bf16.msra.mxu0 0
        %875 = vmatprep.subr.bf16.mxu0 0
        %876 = vmatpush1.bf16.msra.mxu0 0
        %877 = vmatprep.subr.bf16.mxu0 0
        %878 = vmatpush1.bf16.msra.mxu0 0
        %879 = vmatprep.subr.bf16.mxu0 0
        %880 = vmatpush1.bf16.msra.mxu0 0
        %881 = vmatprep.subr.bf16.mxu0 0
        %882 = vmatpush1.bf16.msra.mxu0 %v865
        %883 = vmatprep.subr.bf16.mxu0 0
        %884 = vmatpush2.bf16.msra.mxu0 0
        %885 = vmatprep.subr.bf16.mxu0 0
        %886 = vmatpush2.bf16.msra.mxu0 0
        %887 = vmatprep.subr.bf16.mxu0 0
        %888 = vmatpush2.bf16.msra.mxu0 0
        %889 = vmatprep.subr.bf16.mxu0 0
        %890 = vmatpush2.bf16.msra.mxu0 0
        %891 = vmatprep.subr.bf16.mxu0 0
        %892 = vmatpush2.bf16.msra.mxu0 0
        %893 = vmatprep.subr.bf16.mxu0 0
        %894 = vmatpush2.bf16.msra.mxu0 0
        %895 = vmatprep.subr.bf16.mxu0 0
        %896 = vmatpush2.bf16.msra.mxu0 0
        %897 = vmatprep.subr.bf16.mxu0 0
        %898 = vmatpush2.bf16.msra.mxu0 0
        %899 = vmatprep.mubr.bf16.mxu0 0
        %900 = vmatmul.mubr.bf16.gmra.mxu0 %v862
        %v901 = vpop.f32.mrf.mxu0
        %v902 = vadd.f32 0.0, %v901
        %v903 = vpop.f32.mrf.mxu0
        %v904 = vpop.f32.mrf.mxu0
        %v905 = vpop.f32.mrf.mxu0
        %906 = vdwg.mxu0
        %908 = vrot.lane.b32.xlu0 %v682, 8
        %v909 = vpop.permute.xlu0 %908
        %912 = vrot.lane.b32.xlu0 %v792, 16
        %v913 = vpop.permute.xlu0 %912
        %916 = vrot.lane.b32.xlu0 %v902, 24
        %v917 = vpop.permute.xlu0 %916
        %v919 = vsel %vm469, %v572, %v909
        %vm920 = vcmask 130048
        %v921 = vsel %vm920, %v919, %v913
        %vm922 = vcmask 195584
        %v923 = vsel %vm922, %v921, %v917
        %v924 = vpack.c.bf16 %v923, %v923
        %v925 = vld [vmem:[#allocation8] sm:$0xf]
        %v926 = vld [vmem:[#allocation8 + $0x4] sm:$0xf]
        %v927 = vld [vmem:[#allocation8 + $0x8] sm:$0xf]
        %v928 = vld [vmem:[#allocation8 + $0xc] sm:$0xf]
        %v929 = vld [vmem:[%s5] sm:$0x1]
        %v931 = vlaneseq
        %v932 = vshrl.u32 %v931, 7
        %v933 = vsub.s32 0, %v932
        %v934 = vrot.slane %v929, %v933
        %v940 = vunpack.c.l.b16 %v925
        %v941 = vunpack.c.l.b16 %v926
        %v942 = vunpack.c.l.b16 %v927
        %v943 = vunpack.c.l.b16 %v928
        %v944 = vpack.c.b16 %v941, %v940
        %v945 = vpack.c.b16 %v943, %v942
        %v949 = vsel %vm410, %v924, 0
        %951 = vmatprep.subr.bf16.mxu0 0
        %952 = vmatpush1.bf16.msra.mxu0 0
        %953 = vmatprep.subr.bf16.mxu0 0
        %954 = vmatpush1.bf16.msra.mxu0 0
        %955 = vmatprep.subr.bf16.mxu0 0
        %956 = vmatpush1.bf16.msra.mxu0 0
        %957 = vmatprep.subr.bf16.mxu0 0
        %958 = vmatpush1.bf16.msra.mxu0 0
        %959 = vmatprep.subr.bf16.mxu0 0
        %960 = vmatpush1.bf16.msra.mxu0 0
        %961 = vmatprep.subr.bf16.mxu0 0
        %962 = vmatpush1.bf16.msra.mxu0 0
        %963 = vmatprep.subr.bf16.mxu0 0
        %964 = vmatpush1.bf16.msra.mxu0 %v945
        %965 = vmatprep.subr.bf16.mxu0 0
        %966 = vmatpush1.bf16.msra.mxu0 %v944
        %967 = vmatprep.subr.bf16.mxu0 0
        %968 = vmatpush2.bf16.msra.mxu0 0
        %969 = vmatprep.subr.bf16.mxu0 0
        %970 = vmatpush2.bf16.msra.mxu0 0
        %971 = vmatprep.subr.bf16.mxu0 0
        %972 = vmatpush2.bf16.msra.mxu0 0
        %973 = vmatprep.subr.bf16.mxu0 0
        %974 = vmatpush2.bf16.msra.mxu0 0
        %975 = vmatprep.subr.bf16.mxu0 0
        %976 = vmatpush2.bf16.msra.mxu0 0
        %977 = vmatprep.subr.bf16.mxu0 0
        %978 = vmatpush2.bf16.msra.mxu0 0
        %979 = vmatprep.subr.bf16.mxu0 0
        %980 = vmatpush2.bf16.msra.mxu0 0
        %981 = vmatprep.subr.bf16.mxu0 0
        %982 = vmatpush2.bf16.msra.mxu0 0
        %983 = vmatprep.mubr.bf16.mxu0 0
        %984 = vmatmul.mubr.bf16.gmra.mxu0 %v949
        %v985 = vpop.f32.mrf.mxu0
        %v986 = vadd.f32 %v934, %v985
        %v987 = vpop.f32.mrf.mxu0
        %v988 = vpop.f32.mrf.mxu0
        %v989 = vpop.f32.mrf.mxu0
        %990 = vdwg.mxu0
        %v991 = vadd.f32 %v986, %v385
        %v992 = vsel %vm410, %v991, 0.0
        %993 = vadd.xlane.f32.xlu0 %v992
        %v994 = vpop.xlane.xlu0 %993
        %v995 = vrcp.pop 32.0
        %v996 = vmul.f32 %v994, %v995
        %v997 = vsub.f32 %v991, %v996
        %v998 = vmul.f32 %v997, %v997
        %v999 = vsel %vm410, %v998, 0.0
        %1000 = vadd.xlane.f32.xlu0 %v999
        %v1001 = vpop.xlane.xlu0 %1000
        %v1002 = vmul.f32 %v1001, %v995
        %v1003 = vadd.f32 %v1002, 1e-12
        %v1004 = vrsqrt.pop %v1003
        %v1005 = vmul.f32 %v997, %v1004
        %v1006 = vld [vmem:[%s6] sm:$0x1]
        %v1008 = vlaneseq
        %v1009 = vshrl.u32 %v1008, 7
        %v1010 = vsub.s32 0, %v1009
        %v1011 = vrot.slane %v1006, %v1010
        %v1013 = vmul.f32 %v1005, %v1011
        %v1014 = vld [vmem:[%s7] sm:$0x1]
        %v1016 = vlaneseq
        %v1017 = vshrl.u32 %v1016, 7
        %v1018 = vsub.s32 0, %v1017
        %v1019 = vrot.slane %v1014, %v1018
        %v1021 = vadd.f32 %v1013, %v1019
        %1022 = vst.msk [vmem:[%s383] sm:$0xff] %vm410, %v1021
        %s1023 = sand.u32 %s215, 1
        %s1024 = scalar_lea.sflag [#allocation4], %s1023
        %s1025 = sand.u32 %s215, 1
        %s1026 = smul.addr %s1025, 8
        %s1027 = scalar_lea.vmem [#allocation10], %s1026
        // Predicated region
        $region69: #{tpu_custom_call.1} parent=51 // pred_check
          %p1028 = pneg %p225
        $region70: #{tpu_custom_call.1} parent=51 // pred_check_branch
          %1030 = sbr.rel (%p1028) target = $region72
        $region71: #{tpu_custom_call.1} parent=51 // pred_region
          %s1032 = ssub.s32 128, 128
          %1033 = vsyncadd %s1024, %s1032
          %s1034 = smul.addr %s29, 128
          %s1035 = scalar_lea.hbm %s8, %s1034
          %s1037 = sshll.u32 %s1027, 4
          %s1038 = int_to_ptr.vmem [resolvable:$true] %s1037
          %1040 = dma.vmem_to_hbm [thread:$0]  %s1038, 128, %s1035, %s1024
        $region72: #{tpu_custom_call.1} parent=51 // pred_fallthru
          _
      $region52: #{tpu_custom_call.1} parent=5 // pred_fallthru
        _
      %p1041 = scmp.le.s32.totalorder 2, %s24
      // Predicated region
      $region73: #{tpu_custom_call.1} parent=5 // pred_check
        %p1042 = pneg %p1041
      $region74: #{tpu_custom_call.1} parent=5 // pred_check_branch
        %1044 = sbr.rel (%p1042) target = $region76
      $region75: #{tpu_custom_call.1} parent=5 // pred_region
        %s1045 = ssub.s32 %s24, 2
        // Predicated region
        $region77: #{tpu_custom_call.1} parent=75 // pred_check
          %p1046 = pneg %p231
        $region78: #{tpu_custom_call.1} parent=75 // pred_check_branch
          %1048 = sbr.rel (%p1046) target = $region80
        $region79: #{tpu_custom_call.1} parent=75 // pred_region
          %s1049 = sand.u32 %s216, 1
          %s1050 = scalar_lea.sflag [#allocation4], %s1049
          %s1051 = sand.u32 %s216, 1
          %s1052 = smul.addr %s1051, 8
          %s1053 = scalar_lea.vmem [#allocation10], %s1052
          %1054 = dma.done %s1050, 128
        $region80: #{tpu_custom_call.1} parent=75 // pred_fallthru
          _
      $region76: #{tpu_custom_call.1} parent=5 // pred_fallthru
        _
    $region6: #{tpu_custom_call.1} parent=1 // loop_footer
      %s28 = sadd.s32 1, %s24
    $region7: #{tpu_custom_call.1} parent=1 // loop_footer_branch
      %23 = sbr.rel target = $region3
    $region8: #{tpu_custom_call.1} parent=1 // loop_exit
      _
    %1055 = vsyncpa [#allocation3], 1
    %s1056 = scalar_lea.sflag [#allocation3], 1
    %1057 = vsyncpa %s1056, 1
    %1058 = vsyncpa [#allocation6], 1
    %s1059 = scalar_lea.sflag [#allocation6], 1
    %1060 = vsyncpa %s1059, 1
    %1061 = vsyncpa [#allocation9], 1
    %1062 = vsyncpa [#allocation4], 1
    %s1063 = scalar_lea.sflag [#allocation4], 1
    %1064 = vsyncpa %s1063, 1

// kernel: tpu_custom_call.1
$region0: #{tpu_custom_call.1}
  #allocation0 [shape = 'u32[]', space=smem, size = 0x4, offset = 0x4, fixed_abs, tag = 'smem constant byte address 0x4 - core index']
  #allocation1 [shape = 'u32[144,128]{1,0:T(1,128)}', space=vmem, size = 0x12000, scoped, tag = 'internal scratch']
  %s0 = inlined_call_operand.hbm [shape: f32[2,8,32], index: 0, kind: input, shape index: {}]
  %s1 = inlined_call_operand.hbm [shape: f32[2,1,8], index: 1, kind: input, shape index: {}]
  %s2 = inlined_call_operand.hbm [shape: bf16[32,96], index: 2, kind: input, shape index: {}]
  %s3 = inlined_call_operand.vmem [shape: f32[1,96], index: 3, kind: input, shape index: {}]
  %s4 = inlined_call_operand.hbm [shape: bf16[32,32], index: 4, kind: input, shape index: {}]
  %s5 = inlined_call_operand.vmem [shape: f32[1,32], index: 5, kind: input, shape index: {}]
  %s6 = inlined_call_operand.vmem [shape: f32[1,32], index: 6, kind: input, shape index: {}]
  %s7 = inlined_call_operand.vmem [shape: f32[1,32], index: 7, kind: input, shape index: {}]
  %s8 = inlined_call_operand.hbm [shape: f32[2,8,32], index: 8, kind: output, shape index: {}]
  %s9 = sld [smem:[#allocation0]]
  $region81: #{tpu_custom_call.1} parent=0
    _
  %s11 = ssub.s32 1, %s9
  %s12 = scalar_select 0, %s11, %s9
  $region1: #{tpu_custom_call.1} parent=0
    #allocation2 [shape = 'u8[8192]{0}', space=vmem, size = 0x2000, scoped, tag = 'input window, operand 0']
    #allocation3 [shape = 's32[2]{0}', space=sflag, size = 0x8, scoped, tag = 'scoped memory for tpu_custom_call.1']
    #allocation4 [shape = 's32[2]{0}', space=sflag, size = 0x8, scoped, tag = 'scoped memory for tpu_custom_call.1']
    #allocation5 [shape = 'u8[1024]{0}', space=vmem, size = 0x400, scoped, tag = 'input window, operand 1']
    #allocation6 [shape = 's32[2]{0}', space=sflag, size = 0x8, scoped, tag = 'scoped memory for tpu_custom_call.1']
    #allocation7 [shape = 'u8[8192]{0}', space=vmem, size = 0x2000, scoped, tag = 'input window, operand 2, single buffered']
    #allocation8 [shape = 'u8[8192]{0}', space=vmem, size = 0x2000, scoped, tag = 'input window, operand 4, single buffered']
    #allocation9 [shape = 's32[1]{0}', space=sflag, size = 0x4, scoped, tag = 'scoped memory for tpu_custom_call.1']
    #allocation10 [shape = 'u8[8192]{0}', space=vmem, size = 0x2000, scoped, tag = 'output window, operand 0']
    %13 = vsyncpa [#allocation3], 0
    %s14 = scalar_lea.sflag [#allocation3], 1
    %15 = vsyncpa %s14, 0
    %16 = vsyncpa [#allocation6], 0
    %s17 = scalar_lea.sflag [#allocation6], 1
    %18 = vsyncpa %s17, 0
    %19 = vsyncpa [#allocation9], 0
    %20 = vsyncpa [#allocation4], 0
    %s21 = scalar_lea.sflag [#allocation4], 1
    %22 = vsyncpa %s21, 0
    loop: start=0, step=1, limit=4
    $region2: #{tpu_custom_call.1} parent=1 // loop_pre_header
      _
    $region3: #{tpu_custom_call.1} parent=1 // loop_header
      %s24 = sphi 0, %s28
      %p25 = scmp.ge.s32.totalorder %s24, 4
      %s34 = sphi 0, %s36
      %s37 = sphi 0, %s34
      %s38 = sphi 0, %s37
      %s54 = sphi 0, %s38
      %s60 = sphi 0, %s62
      %s63 = sphi 0, %s60
      %s64 = sphi 0, %s63
      %s80 = sphi 0, %s64
      %s84 = sphi 0, %s84
      %s86 = sphi 0, %s84
      %s87 = sphi 0, %s86
      %s101 = sphi 0, %s87
      %s105 = sphi 0, %s105
      %s107 = sphi 0, %s105
      %s108 = sphi 0, %s107
      %s122 = sphi 0, %s108
      %s126 = sphi 0, %s126
      %s128 = sphi 0, %s126
      %s129 = sphi 0, %s128
      %s143 = sphi 0, %s129
      %s147 = sphi 0, %s147
      %s149 = sphi 0, %s147
      %s150 = sphi 0, %s149
      %s164 = sphi 0, %s150
      %s168 = sphi 0, %s168
      %s170 = sphi 0, %s168
      %s171 = sphi 0, %s170
      %s185 = sphi 0, %s171
      %s189 = sphi 0, %s189
      %s191 = sphi 0, %s189
      %s192 = sphi 0, %s191
      %s206 = sphi 0, %s192
      %s212 = sphi 0, %s214
      %s215 = sphi 0, %s212
      %s216 = sphi 0, %s215
      %s232 = sphi 0, %s216
    $region4: #{tpu_custom_call.1} parent=1 // loop_header_branch
      %27 = sbr.rel (%p25) target = $region8
    $region5: #{tpu_custom_call.1} parent=1 // loop_body
      %s29 = ssub.s32 %s24, 1
      %s30 = ssub.s32 %s24, 2
      %s31 = sadd.s32 %s24, 1
      %s32 = ssub.s32 %s24, %s31
      %p33 = scmp.eq.s32.totalorder %s32, 0
      %s35 = sadd.s32 %s34, 1
      %s36 = scalar_select %p33, %s34, %s35
      %p39 = pneg %p33
      %p40 = scmp.eq.s32.totalorder %s24, 1
      %p41 = por %p39, %p40
      %p42 = scmp.ne.s32.totalorder %s34, %s37
      %p43 = scmp.eq.s32.totalorder %s24, 0
      %p44 = por %p42, %p43
      %p45 = scmp.ne.s32.totalorder %s34, %s37
      %p46 = scmp.eq.s32.totalorder %s29, 1
      %p47 = por %p45, %p46
      %p48 = scmp.ne.s32.totalorder %s37, %s38
      %p49 = scmp.eq.s32.totalorder %s29, 0
      %p50 = por %p48, %p49
      %p51 = scmp.ne.s32.totalorder %s37, %s38
      %p52 = scmp.eq.s32.totalorder %s30, 1
      %p53 = por %p51, %p52
      %p55 = scmp.ne.s32.totalorder %s38, %s54
      %p56 = scmp.eq.s32.totalorder %s30, 0
      %p57 = por %p55, %p56
      %s58 = ssub.s32 %s24, %s31
      %p59 = scmp.eq.s32.totalorder %s58, 0
      %s61 = sadd.s32 %s60, 1
      %s62 = scalar_select %p59, %s60, %s61
      %p65 = pneg %p59
      %p66 = scmp.eq.s32.totalorder %s24, 1
      %p67 = por %p65, %p66
      %p68 = scmp.ne.s32.totalorder %s60, %s63
      %p69 = scmp.eq.s32.totalorder %s24, 0
      %p70 = por %p68, %p69
      %p71 = scmp.ne.s32.totalorder %s60, %s63
      %p72 = scmp.eq.s32.totalorder %s29, 1
      %p73 = por %p71, %p72
      %p74 = scmp.ne.s32.totalorder %s63, %s64
      %p75 = scmp.eq.s32.totalorder %s29, 0
      %p76 = por %p74, %p75
      %p77 = scmp.ne.s32.totalorder %s63, %s64
      %p78 = scmp.eq.s32.totalorder %s30, 1
      %p79 = por %p77, %p78
      %p81 = scmp.ne.s32.totalorder %s64, %s80
      %p82 = scmp.eq.s32.totalorder %s30, 0
      %p83 = por %p81, %p82
      %s85 = sadd.s32 %s84, 1
      %p88 = scmp.eq.s32.totalorder %s24, 1
      %p89 = scmp.ne.s32.totalorder %s84, %s86
      %p90 = scmp.eq.s32.totalorder %s24, 0
      %p91 = por %p89, %p90
      %p92 = scmp.ne.s32.totalorder %s84, %s86
      %p93 = scmp.eq.s32.totalorder %s29, 1
      %p94 = por %p92, %p93
      %p95 = scmp.ne.s32.totalorder %s86, %s87
      %p96 = scmp.eq.s32.totalorder %s29, 0
      %p97 = por %p95, %p96
      %p98 = scmp.ne.s32.totalorder %s86, %s87
      %p99 = scmp.eq.s32.totalorder %s30, 1
      %p100 = por %p98, %p99
      %p102 = scmp.ne.s32.totalorder %s87, %s101
      %p103 = scmp.eq.s32.totalorder %s30, 0
      %p104 = por %p102, %p103
      %s106 = sadd.s32 %s105, 1
      %p109 = scmp.eq.s32.totalorder %s24, 1
      %p110 = scmp.ne.s32.totalorder %s105, %s107
      %p111 = scmp.eq.s32.totalorder %s24, 0
      %p112 = por %p110, %p111
      %p113 = scmp.ne.s32.totalorder %s105, %s107
      %p114 = scmp.eq.s32.totalorder %s29, 1
      %p115 = por %p113, %p114
      %p116 = scmp.ne.s32.totalorder %s107, %s108
      %p117 = scmp.eq.s32.totalorder %s29, 0
      %p118 = por %p116, %p117
      %p119 = scmp.ne.s32.totalorder %s107, %s108
      %p120 = scmp.eq.s32.totalorder %s30, 1
      %p121 = por %p119, %p120
      %p123 = scmp.ne.s32.totalorder %s108, %s122
      %p124 = scmp.eq.s32.totalorder %s30, 0
      %p125 = por %p123, %p124
      %s127 = sadd.s32 %s126, 1
      %p130 = scmp.eq.s32.totalorder %s24, 1
      %p131 = scmp.ne.s32.totalorder %s126, %s128
      %p132 = scmp.eq.s32.totalorder %s24, 0
      %p133 = por %p131, %p132
      %p134 = scmp.ne.s32.totalorder %s126, %s128
      %p135 = scmp.eq.s32.totalorder %s29, 1
      %p136 = por %p134, %p135
      %p137 = scmp.ne.s32.totalorder %s128, %s129
      %p138 = scmp.eq.s32.totalorder %s29, 0
      %p139 = por %p137, %p138
      %p140 = scmp.ne.s32.totalorder %s128, %s129
      %p141 = scmp.eq.s32.totalorder %s30, 1
      %p142 = por %p140, %p141
      %p144 = scmp.ne.s32.totalorder %s129, %s143
      %p145 = scmp.eq.s32.totalorder %s30, 0
      %p146 = por %p144, %p145
      %s148 = sadd.s32 %s147, 1
      %p151 = scmp.eq.s32.totalorder %s24, 1
      %p152 = scmp.ne.s32.totalorder %s147, %s149
      %p153 = scmp.eq.s32.totalorder %s24, 0
      %p154 = por %p152, %p153
      %p155 = scmp.ne.s32.totalorder %s147, %s149
      %p156 = scmp.eq.s32.totalorder %s29, 1
      %p157 = por %p155, %p156
      %p158 = scmp.ne.s32.totalorder %s149, %s150
      %p159 = scmp.eq.s32.totalorder %s29, 0
      %p160 = por %p158, %p159
      %p161 = scmp.ne.s32.totalorder %s149, %s150
      %p162 = scmp.eq.s32.totalorder %s30, 1
      %p163 = por %p161, %p162
      %p165 = scmp.ne.s32.totalorder %s150, %s164
      %p166 = scmp.eq.s32.totalorder %s30, 0
      %p167 = por %p165, %p166
      %s169 = sadd.s32 %s168, 1
      %p172 = scmp.eq.s32.totalorder %s24, 1
      %p173 = scmp.ne.s32.totalorder %s168, %s170
      %p174 = scmp.eq.s32.totalorder %s24, 0
      %p175 = por %p173, %p174
      %p176 = scmp.ne.s32.totalorder %s168, %s170
      %p177 = scmp.eq.s32.totalorder %s29, 1
      %p178 = por %p176, %p177
      %p179 = scmp.ne.s32.totalorder %s170, %s171
      %p180 = scmp.eq.s32.totalorder %s29, 0
      %p181 = por %p179, %p180
      %p182 = scmp.ne.s32.totalorder %s170, %s171
      %p183 = scmp.eq.s32.totalorder %s30, 1
      %p184 = por %p182, %p183
      %p186 = scmp.ne.s32.totalorder %s171, %s185
      %p187 = scmp.eq.s32.totalorder %s30, 0
      %p188 = por %p186, %p187
      %s190 = sadd.s32 %s189, 1
      %p193 = scmp.eq.s32.totalorder %s24, 1
      %p194 = scmp.ne.s32.totalorder %s189, %s191
      %p195 = scmp.eq.s32.totalorder %s24, 0
      %p196 = por %p194, %p195
      %p197 = scmp.ne.s32.totalorder %s189, %s191
      %p198 = scmp.eq.s32.totalorder %s29, 1
      %p199 = por %p197, %p198
      %p200 = scmp.ne.s32.totalorder %s191, %s192
      %p201 = scmp.eq.s32.totalorder %s29, 0
      %p202 = por %p200, %p201
      %p203 = scmp.ne.s32.totalorder %s191, %s192
      %p204 = scmp.eq.s32.totalorder %s30, 1
      %p205 = por %p203, %p204
      %p207 = scmp.ne.s32.totalorder %s192, %s206
      %p208 = scmp.eq.s32.totalorder %s30, 0
      %p209 = por %p207, %p208
      %s210 = ssub.s32 %s24, %s31
      %p211 = scmp.eq.s32.totalorder %s210, 0
      %s213 = sadd.s32 %s212, 1
      %s214 = scalar_select %p211, %s212, %s213
      %p217 = pneg %p211
      %p218 = scmp.eq.s32.totalorder %s24, 1
      %p219 = por %p217, %p218
      %p220 = scmp.ne.s32.totalorder %s212, %s215
      %p221 = scmp.eq.s32.totalorder %s24, 0
      %p222 = por %p220, %p221
      %p223 = scmp.ne.s32.totalorder %s212, %s215
      %p224 = scmp.eq.s32.totalorder %s29, 1
      %p225 = por %p223, %p224
      %p226 = scmp.ne.s32.totalorder %s215, %s216
      %p227 = scmp.eq.s32.totalorder %s29, 0
      %p228 = por %p226, %p227
      %p229 = scmp.ne.s32.totalorder %s215, %s216
      %p230 = scmp.eq.s32.totalorder %s30, 1
      %p231 = por %p229, %p230
      %p233 = scmp.ne.s32.totalorder %s216, %s232
      %p234 = scmp.eq.s32.totalorder %s30, 0
      %p235 = por %p233, %p234
      %p236 = scmp.le.s32.totalorder 1, %s24
      %p237 = scmp.lt.s32.totalorder %s24, 3
      %p238 = pnand %p236, %p237
      %p239 = pneg %p238
      // Predicated region
      $region9: #{tpu_custom_call.1} parent=5 // pred_check
        _
      $region10: #{tpu_custom_call.1} parent=5 // pred_check_branch
        %241 = sbr.rel (%p238) target = $region12
      $region11: #{tpu_custom_call.1} parent=5 // pred_region
        %s242 = ssub.s32 %s24, 1
        // Predicated region
        $region13: #{tpu_custom_call.1} parent=11 // pred_check
          %p243 = pneg %p97
        $region14: #{tpu_custom_call.1} parent=11 // pred_check_branch
          %245 = sbr.rel (%p243) target = $region16
        $region15: #{tpu_custom_call.1} parent=11 // pred_region
          %s247 = ssub.s32 256, 256
          %248 = vsyncadd [#allocation6], %s247
          %s249 = sshll.u32 [#allocation7], 4
          %s250 = int_to_ptr.vmem [resolvable:$true] %s249
          %255 = dma.hbm_to_vmem [thread:$0]  %s2, 256, %s250, [#allocation6], 64, 64, 4
        $region16: #{tpu_custom_call.1} parent=11 // pred_fallthru
          _
        // Predicated region
        $region17: #{tpu_custom_call.1} parent=11 // pred_check
          %p256 = pneg %p118
        $region18: #{tpu_custom_call.1} parent=11 // pred_check_branch
          %258 = sbr.rel (%p256) target = $region20
        $region19: #{tpu_custom_call.1} parent=11 // pred_region
          _
        $region20: #{tpu_custom_call.1} parent=11 // pred_fallthru
          _
        // Predicated region
        $region21: #{tpu_custom_call.1} parent=11 // pred_check
          %p259 = pneg %p139
        $region22: #{tpu_custom_call.1} parent=11 // pred_check_branch
          %261 = sbr.rel (%p259) target = $region24
        $region23: #{tpu_custom_call.1} parent=11 // pred_region
          %s263 = ssub.s32 256, 256
          %264 = vsyncadd [#allocation9], %s263
          %s265 = sshll.u32 [#allocation8], 4
          %s266 = int_to_ptr.vmem [resolvable:$true] %s265
          %271 = dma.hbm_to_vmem [thread:$0]  %s4, 256, %s266, [#allocation9], 64, 64, 4
        $region24: #{tpu_custom_call.1} parent=11 // pred_fallthru
          _
        // Predicated region
        $region25: #{tpu_custom_call.1} parent=11 // pred_check
          %p272 = pneg %p160
        $region26: #{tpu_custom_call.1} parent=11 // pred_check_branch
          %274 = sbr.rel (%p272) target = $region28
        $region27: #{tpu_custom_call.1} parent=11 // pred_region
          _
        $region28: #{tpu_custom_call.1} parent=11 // pred_fallthru
          _
        // Predicated region
        $region29: #{tpu_custom_call.1} parent=11 // pred_check
          %p275 = pneg %p181
        $region30: #{tpu_custom_call.1} parent=11 // pred_check_branch
          %277 = sbr.rel (%p275) target = $region32
        $region31: #{tpu_custom_call.1} parent=11 // pred_region
          _
        $region32: #{tpu_custom_call.1} parent=11 // pred_fallthru
          _
        // Predicated region
        $region33: #{tpu_custom_call.1} parent=11 // pred_check
          %p278 = pneg %p202
        $region34: #{tpu_custom_call.1} parent=11 // pred_check_branch
          %280 = sbr.rel (%p278) target = $region36
        $region35: #{tpu_custom_call.1} parent=11 // pred_region
          _
        $region36: #{tpu_custom_call.1} parent=11 // pred_fallthru
          _
      $region12: #{tpu_custom_call.1} parent=5 // pred_fallthru
        _
      %p281 = scmp.lt.s32.totalorder %s24, 2
      // Predicated region
      $region37: #{tpu_custom_call.1} parent=5 // pred_check
        %p282 = pneg %p281
      $region38: #{tpu_custom_call.1} parent=5 // pred_check_branch
        %284 = sbr.rel (%p282) target = $region40
      $region39: #{tpu_custom_call.1} parent=5 // pred_region
        // Predicated region
        $region41: #{tpu_custom_call.1} parent=39 // pred_check
          %p285 = pneg %p44
        $region42: #{tpu_custom_call.1} parent=39 // pred_check_branch
          %287 = sbr.rel (%p285) target = $region44
        $region43: #{tpu_custom_call.1} parent=39 // pred_region
          %s288 = sand.u32 %s34, 1
          %s289 = scalar_lea.sflag [#allocation3], %s288
          %s290 = sand.u32 %s34, 1
          %s291 = smul.addr %s290, 8
          %s292 = scalar_lea.vmem [#allocation2], %s291
          %s294 = ssub.s32 128, 128
          %295 = vsyncadd %s289, %s294
          %s296 = smul.addr %s24, 128
          %s297 = scalar_lea.hbm %s0, %s296
          %s299 = sshll.u32 %s292, 4
          %s300 = int_to_ptr.vmem [resolvable:$true] %s299
          %302 = dma.hbm_to_vmem [thread:$0]  %s297, 128, %s300, %s289
        $region44: #{tpu_custom_call.1} parent=39 // pred_fallthru
          _
        // Predicated region
        $region45: #{tpu_custom_call.1} parent=39 // pred_check
          %p303 = pneg %p70
        $region46: #{tpu_custom_call.1} parent=39 // pred_check_branch
          %305 = sbr.rel (%p303) target = $region48
        $region47: #{tpu_custom_call.1} parent=39 // pred_region
          %s306 = sand.u32 %s24, 1
          %s307 = scalar_lea.sflag [#allocation6], %s306
          %s308 = sand.u32 %s60, 1
          %s309 = scalar_lea.vmem [#allocation5], %s308
          %s311 = ssub.s32 16, 16
          %312 = vsyncadd %s307, %s311
          %s313 = smul.addr %s24, 16
          %s314 = scalar_lea.hbm %s1, %s313
          %s316 = sshll.u32 %s309, 4
          %s317 = int_to_ptr.vmem [resolvable:$true] %s316
          %319 = dma.hbm_to_vmem [thread:$0]  %s314, 16, %s317, %s307
        $region48: #{tpu_custom_call.1} parent=39 // pred_fallthru
          _
      $region40: #{tpu_custom_call.1} parent=5 // pred_fallthru
        _
      %p320 = scmp.le.s32.totalorder 1, %s24
      %p321 = scmp.lt.s32.totalorder %s24, 3
      %p322 = pnand %p320, %p321
      %p323 = pneg %p322
      // Predicated region
      $region49: #{tpu_custom_call.1} parent=5 // pred_check
        _
      $region50: #{tpu_custom_call.1} parent=5 // pred_check_branch
        %325 = sbr.rel (%p322) target = $region52
      $region51: #{tpu_custom_call.1} parent=5 // pred_region
        %s326 = ssub.s32 %s24, 1
        %s327 = sand.u32 %s37, 1
        %s328 = scalar_lea.sflag [#allocation3], %s327
        %s329 = sand.u32 %s37, 1
        %s330 = smul.addr %s329, 8
        %s331 = scalar_lea.vmem [#allocation2], %s330
        // Predicated region
        $region53: #{tpu_custom_call.1} parent=51 // pred_check
          %p332 = pneg %p50
        $region54: #{tpu_custom_call.1} parent=51 // pred_check_branch
          %334 = sbr.rel (%p332) target = $region56
        $region55: #{tpu_custom_call.1} parent=51 // pred_region
          %335 = dma.done %s328, 128
        $region56: #{tpu_custom_call.1} parent=51 // pred_fallthru
          _
        %s336 = sand.u32 %s29, 1
        %s337 = scalar_lea.sflag [#allocation6], %s336
        %s338 = sand.u32 %s63, 1
        %s339 = scalar_lea.vmem [#allocation5], %s338
        // Predicated region
        $region57: #{tpu_custom_call.1} parent=51 // pred_check
          %p340 = pneg %p76
        $region58: #{tpu_custom_call.1} parent=51 // pred_check_branch
          %342 = sbr.rel (%p340) target = $region60
        $region59: #{tpu_custom_call.1} parent=51 // pred_region
          %343 = dma.done %s337, 16
        $region60: #{tpu_custom_call.1} parent=51 // pred_fallthru
          _
        // Predicated region
        $region61: #{tpu_custom_call.1} parent=51 // pred_check
          %p344 = pneg %p97
        $region62: #{tpu_custom_call.1} parent=51 // pred_check_branch
          %346 = sbr.rel (%p344) target = $region64
        $region63: #{tpu_custom_call.1} parent=51 // pred_region
          %347 = dma.done [#allocation6], 256
        $region64: #{tpu_custom_call.1} parent=51 // pred_fallthru
          _
        // Predicated region
        $region65: #{tpu_custom_call.1} parent=51 // pred_check
          %p348 = pneg %p139
        $region66: #{tpu_custom_call.1} parent=51 // pred_check_branch
          %350 = sbr.rel (%p348) target = $region68
        $region67: #{tpu_custom_call.1} parent=51 // pred_region
          %351 = dma.done [#allocation9], 256
        $region68: #{tpu_custom_call.1} parent=51 // pred_fallthru
          _
        %s352 = sand.u32 %s37, 1
        %s353 = scalar_lea.sflag [#allocation3], %s352
        %s354 = sand.u32 %s37, 1
        %s355 = smul.addr %s354, 8
        %s356 = scalar_lea.vmem [#allocation2], %s355
        %p357 = pneg %p50
        %p358 = pneg %p47
        %s359 = sand.u32 %s29, 1
        %s360 = scalar_lea.sflag [#allocation6], %s359
        %s361 = sand.u32 %s63, 1
        %s362 = scalar_lea.vmem [#allocation5], %s361
        %p363 = pneg %p76
        %p364 = pneg %p73
        %p365 = pneg %p97
        %p366 = pneg %p94
        %p367 = pneg %p118
        %p368 = pneg %p115
        %p369 = pneg %p139
        %p370 = pneg %p136
        %p371 = pneg %p160
        %p372 = pneg %p157
        %p373 = pneg %p181
        %p374 = pneg %p178
        %p375 = pneg %p202
        %p376 = pneg %p199
        %p377 = pneg %p228
        %p378 = pneg %p225
        %s379 = sand.u32 %s215, 1
        %s380 = scalar_lea.sflag [#allocation4], %s379
        %s381 = sand.u32 %s215, 1
        %s382 = smul.addr %s381, 8
        %s383 = scalar_lea.vmem [#allocation10], %s382
        %v385 = vld [vmem:[%s331] sm:$0xff]
        %v386 = vpack.c.bf16 %v385, %v385
        %v387 = vld [vmem:[#allocation7] sm:$0xf]
        %v388 = vld [vmem:[#allocation7 + $0x4] sm:$0xf]
        %v389 = vld [vmem:[#allocation7 + $0x8] sm:$0xf]
        %v390 = vld [vmem:[#allocation7 + $0xc] sm:$0xf]
        %v391 = vld [vmem:[%s3] sm:$0x1]
        %v393 = vlaneseq
        %v394 = vshrl.u32 %v393, 7
        %v395 = vsub.s32 0, %v394
        %v396 = vrot.slane %v391, %v395
        %v402 = vunpack.c.l.b16 %v387
        %v403 = vunpack.c.l.b16 %v388
        %v404 = vunpack.c.l.b16 %v389
        %v405 = vunpack.c.l.b16 %v390
        %v406 = vpack.c.b16 %v403, %v402
        %v407 = vpack.c.b16 %v405, %v404
        %vm410 = vcmask 261120
        %v412 = vsel %vm410, %v386, 0
        %414 = vmatprep.subr.bf16.mxu0 0
        %415 = vmatpush1.bf16.msra.mxu0 0
        %416 = vmatprep.subr.bf16.mxu0 0
        %417 = vmatpush1.bf16.msra.mxu0 0
        %418 = vmatprep.subr.bf16.mxu0 0
        %419 = vmatpush1.bf16.msra.mxu0 0
        %420 = vmatprep.subr.bf16.mxu0 0
        %421 = vmatpush1.bf16.msra.mxu0 0
        %422 = vmatprep.subr.bf16.mxu0 0
        %423 = vmatpush1.bf16.msra.mxu0 0
        %424 = vmatprep.subr.bf16.mxu0 0
        %425 = vmatpush1.bf16.msra.mxu0 0
        %426 = vmatprep.subr.bf16.mxu0 0
        %427 = vmatpush1.bf16.msra.mxu0 %v407
        %428 = vmatprep.subr.bf16.mxu0 0
        %429 = vmatpush1.bf16.msra.mxu0 %v406
        %430 = vmatprep.subr.bf16.mxu0 0
        %431 = vmatpush2.bf16.msra.mxu0 0
        %432 = vmatprep.subr.bf16.mxu0 0
        %433 = vmatpush2.bf16.msra.mxu0 0
        %434 = vmatprep.subr.bf16.mxu0 0
        %435 = vmatpush2.bf16.msra.mxu0 0
        %436 = vmatprep.subr.bf16.mxu0 0
        %437 = vmatpush2.bf16.msra.mxu0 0
        %438 = vmatprep.subr.bf16.mxu0 0
        %439 = vmatpush2.bf16.msra.mxu0 0
        %440 = vmatprep.subr.bf16.mxu0 0
        %441 = vmatpush2.bf16.msra.mxu0 0
        %442 = vmatprep.subr.bf16.mxu0 0
        %443 = vmatpush2.bf16.msra.mxu0 0
        %444 = vmatprep.subr.bf16.mxu0 0
        %445 = vmatpush2.bf16.msra.mxu0 0
        %446 = vmatprep.mubr.bf16.mxu0 0
        %447 = vmatmul.mubr.bf16.gmra.mxu0 %v412
        %v448 = vpop.f32.mrf.mxu0
        %v449 = vadd.f32 %v396, %v448
        %v450 = vpop.f32.mrf.mxu0
        %v451 = vpop.f32.mrf.mxu0
        %v452 = vpop.f32.mrf.mxu0
        %453 = vdwg.mxu0
        %v454 = vpack.c.bf16 %v449, %v449
        %v455 = vld [vmem:[%s339] sm:$0x1]
        %vm456 = vcmp.eq.f32.partialorder %v455, 0.0
        %v457 = vsel %vm456, 1, 0
        %v458 = vcvt.s32.f32 %v457
        %v459 = vmul.f32 %v458, -1e+09
        %v461 = vlaneseq
        %v462 = vshrl.u32 %v461, 7
        %v463 = vsub.s32 0, %v462
        %v464 = vrot.slane %v459, %v463
        %467 = vrot.lane.b32.xlu0 %v454, 96
        %v468 = vpop.permute.xlu0 %467
        %vm469 = vcmask 64512
        %v471 = vsel %vm469, %v454, 0
        %v474 = vsel %vm469, %v468, 0
        %476 = vmatprep.subr.bf16.mxu0 0
        %477 = vmatpush1.bf16.xpose.msra.mxu0 0
        %478 = vmatprep.subr.bf16.mxu0 0
        %479 = vmatpush1.bf16.xpose.msra.mxu0 0
        %480 = vmatprep.subr.bf16.mxu0 0
        %481 = vmatpush1.bf16.xpose.msra.mxu0 0
        %482 = vmatprep.subr.bf16.mxu0 0
        %483 = vmatpush1.bf16.xpose.msra.mxu0 0
        %484 = vmatprep.subr.bf16.mxu0 0
        %485 = vmatpush1.bf16.xpose.msra.mxu0 0
        %486 = vmatprep.subr.bf16.mxu0 0
        %487 = vmatpush1.bf16.xpose.msra.mxu0 0
        %488 = vmatprep.subr.bf16.mxu0 0
        %489 = vmatpush1.bf16.xpose.msra.mxu0 0
        %490 = vmatprep.subr.bf16.mxu0 0
        %491 = vmatpush1.bf16.xpose.msra.mxu0 %v474
        %492 = vmatprep.subr.bf16.mxu0 0
        %493 = vmatpush2.bf16.xpose.msra.mxu0 0
        %494 = vmatprep.subr.bf16.mxu0 0
        %495 = vmatpush2.bf16.xpose.msra.mxu0 0
        %496 = vmatprep.subr.bf16.mxu0 0
        %497 = vmatpush2.bf16.xpose.msra.mxu0 0
        %498 = vmatprep.subr.bf16.mxu0 0
        %499 = vmatpush2.bf16.xpose.msra.mxu0 0
        %500 = vmatprep.subr.bf16.mxu0 0
        %501 = vmatpush2.bf16.xpose.msra.mxu0 0
        %502 = vmatprep.subr.bf16.mxu0 0
        %503 = vmatpush2.bf16.xpose.msra.mxu0 0
        %504 = vmatprep.subr.bf16.mxu0 0
        %505 = vmatpush2.bf16.xpose.msra.mxu0 0
        %506 = vmatprep.subr.bf16.mxu0 0
        %507 = vmatpush2.bf16.xpose.msra.mxu0 0
        %508 = vmatprep.mubr.bf16.mxu0 0
        %509 = vmatmul.mubr.bf16.gmra.mxu0 %v471
        %v510 = vpop.f32.mrf.mxu0
        %v511 = vadd.f32 %v464, %v510
        %v512 = vpop.f32.mrf.mxu0
        %v513 = vpop.f32.mrf.mxu0
        %v514 = vpop.f32.mrf.mxu0
        %515 = vdwg.mxu0
        %v516 = vsel %vm469, %v511, -inf
        %517 = vmax.xlane.f32.xlu0 %v516
        %v518 = vpop.xlane.xlu0 %517
        %v519 = vsub.f32 %v511, %v518
        %v520 = vmul.f32 %v519, 1.442695
        %v521 = vpow.pop %v520
        %v522 = vsel %vm469, %v521, 0.0
        %523 = vadd.xlane.f32.xlu0 %v522
        %v524 = vpop.xlane.xlu0 %523
        %v525 = vrcp.pop %v524
        %v526 = vmul.f32 %v521, %v525
        %v527 = vpack.c.bf16 %v526, %v526
        %528 = vrot.lane.b32.xlu0 %v454, 64
        %v529 = vpop.permute.xlu0 %528
        %v531 = vsel %vm469, %v527, 0
        %vm533 = vcmask 1043456
        %v535 = vsel %vm533, %v529, 0
        %537 = vmatprep.subr.bf16.mxu0 0
        %538 = vmatpush1.bf16.msra.mxu0 0
        %539 = vmatprep.subr.bf16.mxu0 0
        %540 = vmatpush1.bf16.msra.mxu0 0
        %541 = vmatprep.subr.bf16.mxu0 0
        %542 = vmatpush1.bf16.msra.mxu0 0
        %543 = vmatprep.subr.bf16.mxu0 0
        %544 = vmatpush1.bf16.msra.mxu0 0
        %545 = vmatprep.subr.bf16.mxu0 0
        %546 = vmatpush1.bf16.msra.mxu0 0
        %547 = vmatprep.subr.bf16.mxu0 0
        %548 = vmatpush1.bf16.msra.mxu0 0
        %549 = vmatprep.subr.bf16.mxu0 0
        %550 = vmatpush1.bf16.msra.mxu0 0
        %551 = vmatprep.subr.bf16.mxu0 0
        %552 = vmatpush1.bf16.msra.mxu0 %v535
        %553 = vmatprep.subr.bf16.mxu0 0
        %554 = vmatpush2.bf16.msra.mxu0 0
        %555 = vmatprep.subr.bf16.mxu0 0
        %556 = vmatpush2.bf16.msra.mxu0 0
        %557 = vmatprep.subr.bf16.mxu0 0
        %558 = vmatpush2.bf16.msra.mxu0 0
        %559 = vmatprep.subr.bf16.mxu0 0
        %560 = vmatpush2.bf16.msra.mxu0 0
        %561 = vmatprep.subr.bf16.mxu0 0
        %562 = vmatpush2.bf16.msra.mxu0 0
        %563 = vmatprep.subr.bf16.mxu0 0
        %564 = vmatpush2.bf16.msra.mxu0 0
        %565 = vmatprep.subr.bf16.mxu0 0
        %566 = vmatpush2.bf16.msra.mxu0 0
        %567 = vmatprep.subr.bf16.mxu0 0
        %568 = vmatpush2.bf16.msra.mxu0 0
        %569 = vmatprep.mubr.bf16.mxu0 0
        %570 = vmatmul.mubr.bf16.gmra.mxu0 %v531
        %v571 = vpop.f32.mrf.mxu0
        %v572 = vadd.f32 0.0, %v571
        %v573 = vpop.f32.mrf.mxu0
        %v574 = vpop.f32.mrf.mxu0
        %v575 = vpop.f32.mrf.mxu0
        %576 = vdwg.mxu0
        %577 = vrot.lane.b32.xlu0 %v454, 120
        %v578 = vpop.permute.xlu0 %577
        %579 = vrot.lane.b32.xlu0 %v454, 88
        %v580 = vpop.permute.xlu0 %579
        %v582 = vsel %vm469, %v578, 0
        %v585 = vsel %vm469, %v580, 0
        %587 = vmatprep.subr.bf16.mxu0 0
        %588 = vmatpush1.bf16.xpose.msra.mxu0 0
        %589 = vmatprep.subr.bf16.mxu0 0
        %590 = vmatpush1.bf16.xpose.msra.mxu0 0
        %591 = vmatprep.subr.bf16.mxu0 0
        %592 = vmatpush1.bf16.xpose.msra.mxu0 0
        %593 = vmatprep.subr.bf16.mxu0 0
        %594 = vmatpush1.bf16.xpose.msra.mxu0 0
        %595 = vmatprep.subr.bf16.mxu0 0
        %596 = vmatpush1.bf16.xpose.msra.mxu0 0
        %597 = vmatprep.subr.bf16.mxu0 0
        %598 = vmatpush1.bf16.xpose.msra.mxu0 0
        %599 = vmatprep.subr.bf16.mxu0 0
        %600 = vmatpush1.bf16.xpose.msra.mxu0 0
        %601 = vmatprep.subr.bf16.mxu0 0
        %602 = vmatpush1.bf16.xpose.msra.mxu0 %v585
        %603 = vmatprep.subr.bf16.mxu0 0
        %604 = vmatpush2.bf16.xpose.msra.mxu0 0
        %605 = vmatprep.subr.bf16.mxu0 0
        %606 = vmatpush2.bf16.xpose.msra.mxu0 0
        %607 = vmatprep.subr.bf16.mxu0 0
        %608 = vmatpush2.bf16.xpose.msra.mxu0 0
        %609 = vmatprep.subr.bf16.mxu0 0
        %610 = vmatpush2.bf16.xpose.msra.mxu0 0
        %611 = vmatprep.subr.bf16.mxu0 0
        %612 = vmatpush2.bf16.xpose.msra.mxu0 0
        %613 = vmatprep.subr.bf16.mxu0 0
        %614 = vmatpush2.bf16.xpose.msra.mxu0 0
        %615 = vmatprep.subr.bf16.mxu0 0
        %616 = vmatpush2.bf16.xpose.msra.mxu0 0
        %617 = vmatprep.subr.bf16.mxu0 0
        %618 = vmatpush2.bf16.xpose.msra.mxu0 0
        %619 = vmatprep.mubr.bf16.mxu0 0
        %620 = vmatmul.mubr.bf16.gmra.mxu0 %v582
        %v621 = vpop.f32.mrf.mxu0
        %v622 = vadd.f32 %v464, %v621
        %v623 = vpop.f32.mrf.mxu0
        %v624 = vpop.f32.mrf.mxu0
        %v625 = vpop.f32.mrf.mxu0
        %626 = vdwg.mxu0
        %v627 = vsel %vm469, %v622, -inf
        %628 = vmax.xlane.f32.xlu0 %v627
        %v629 = vpop.xlane.xlu0 %628
        %v630 = vsub.f32 %v622, %v629
        %v631 = vmul.f32 %v630, 1.442695
        %v632 = vpow.pop %v631
        %v633 = vsel %vm469, %v632, 0.0
        %634 = vadd.xlane.f32.xlu0 %v633
        %v635 = vpop.xlane.xlu0 %634
        %v636 = vrcp.pop %v635
        %v637 = vmul.f32 %v632, %v636
        %v638 = vpack.c.bf16 %v637, %v637
        %639 = vrot.lane.b32.xlu0 %v454, 56
        %v640 = vpop.permute.xlu0 %639
        %v642 = vsel %vm469, %v638, 0
        %v645 = vsel %vm533, %v640, 0
        %647 = vmatprep.subr.bf16.mxu0 0
        %648 = vmatpush1.bf16.msra.mxu0 0
        %649 = vmatprep.subr.bf16.mxu0 0
        %650 = vmatpush1.bf16.msra.mxu0 0
        %651 = vmatprep.subr.bf16.mxu0 0
        %652 = vmatpush1.bf16.msra.mxu0 0
        %653 = vmatprep.subr.bf16.mxu0 0
        %654 = vmatpush1.bf16.msra.mxu0 0
        %655 = vmatprep.subr.bf16.mxu0 0
        %656 = vmatpush1.bf16.msra.mxu0 0
        %657 = vmatprep.subr.bf16.mxu0 0
        %658 = vmatpush1.bf16.msra.mxu0 0
        %659 = vmatprep.subr.bf16.mxu0 0
        %660 = vmatpush1.bf16.msra.mxu0 0
        %661 = vmatprep.subr.bf16.mxu0 0
        %662 = vmatpush1.bf16.msra.mxu0 %v645
        %663 = vmatprep.subr.bf16.mxu0 0
        %664 = vmatpush2.bf16.msra.mxu0 0
        %665 = vmatprep.subr.bf16.mxu0 0
        %666 = vmatpush2.bf16.msra.mxu0 0
        %667 = vmatprep.subr.bf16.mxu0 0
        %668 = vmatpush2.bf16.msra.mxu0 0
        %669 = vmatprep.subr.bf16.mxu0 0
        %670 = vmatpush2.bf16.msra.mxu0 0
        %671 = vmatprep.subr.bf16.mxu0 0
        %672 = vmatpush2.bf16.msra.mxu0 0
        %673 = vmatprep.subr.bf16.mxu0 0
        %674 = vmatpush2.bf16.msra.mxu0 0
        %675 = vmatprep.subr.bf16.mxu0 0
        %676 = vmatpush2.bf16.msra.mxu0 0
        %677 = vmatprep.subr.bf16.mxu0 0
        %678 = vmatpush2.bf16.msra.mxu0 0
        %679 = vmatprep.mubr.bf16.mxu0 0
        %680 = vmatmul.mubr.bf16.gmra.mxu0 %v642
        %v681 = vpop.f32.mrf.mxu0
        %v682 = vadd.f32 0.0, %v681
        %v683 = vpop.f32.mrf.mxu0
        %v684 = vpop.f32.mrf.mxu0
        %v685 = vpop.f32.mrf.mxu0
        %686 = vdwg.mxu0
        %687 = vrot.lane.b32.xlu0 %v454, 112
        %v688 = vpop.permute.xlu0 %687
        %689 = vrot.lane.b32.xlu0 %v454, 80
        %v690 = vpop.permute.xlu0 %689
        %v692 = vsel %vm469, %v688, 0
        %v695 = vsel %vm469, %v690, 0
        %697 = vmatprep.subr.bf16.mxu0 0
        %698 = vmatpush1.bf16.xpose.msra.mxu0 0
        %699 = vmatprep.subr.bf16.mxu0 0
        %700 = vmatpush1.bf16.xpose.msra.mxu0 0
        %701 = vmatprep.subr.bf16.mxu0 0
        %702 = vmatpush1.bf16.xpose.msra.mxu0 0
        %703 = vmatprep.subr.bf16.mxu0 0
        %704 = vmatpush1.bf16.xpose.msra.mxu0 0
        %705 = vmatprep.subr.bf16.mxu0 0
        %706 = vmatpush1.bf16.xpose.msra.mxu0 0
        %707 = vmatprep.subr.bf16.mxu0 0
        %708 = vmatpush1.bf16.xpose.msra.mxu0 0
        %709 = vmatprep.subr.bf16.mxu0 0
        %710 = vmatpush1.bf16.xpose.msra.mxu0 0
        %711 = vmatprep.subr.bf16.mxu0 0
        %712 = vmatpush1.bf16.xpose.msra.mxu0 %v695
        %713 = vmatprep.subr.bf16.mxu0 0
        %714 = vmatpush2.bf16.xpose.msra.mxu0 0
        %715 = vmatprep.subr.bf16.mxu0 0
        %716 = vmatpush2.bf16.xpose.msra.mxu0 0
        %717 = vmatprep.subr.bf16.mxu0 0
        %718 = vmatpush2.bf16.xpose.msra.mxu0 0
        %719 = vmatprep.subr.bf16.mxu0 0
        %720 = vmatpush2.bf16.xpose.msra.mxu0 0
        %721 = vmatprep.subr.bf16.mxu0 0
        %722 = vmatpush2.bf16.xpose.msra.mxu0 0
        %723 = vmatprep.subr.bf16.mxu0 0
        %724 = vmatpush2.bf16.xpose.msra.mxu0 0
        %725 = vmatprep.subr.bf16.mxu0 0
        %726 = vmatpush2.bf16.xpose.msra.mxu0 0
        %727 = vmatprep.subr.bf16.mxu0 0
        %728 = vmatpush2.bf16.xpose.msra.mxu0 0
        %729 = vmatprep.mubr.bf16.mxu0 0
        %730 = vmatmul.mubr.bf16.gmra.mxu0 %v692
        %v731 = vpop.f32.mrf.mxu0
        %v732 = vadd.f32 %v464, %v731
        %v733 = vpop.f32.mrf.mxu0
        %v734 = vpop.f32.mrf.mxu0
        %v735 = vpop.f32.mrf.mxu0
        %736 = vdwg.mxu0
        %v737 = vsel %vm469, %v732, -inf
        %738 = vmax.xlane.f32.xlu0 %v737
        %v739 = vpop.xlane.xlu0 %738
        %v740 = vsub.f32 %v732, %v739
        %v741 = vmul.f32 %v740, 1.442695
        %v742 = vpow.pop %v741
        %v743 = vsel %vm469, %v742, 0.0
        %744 = vadd.xlane.f32.xlu0 %v743
        %v745 = vpop.xlane.xlu0 %744
        %v746 = vrcp.pop %v745
        %v747 = vmul.f32 %v742, %v746
        %v748 = vpack.c.bf16 %v747, %v747
        %749 = vrot.lane.b32.xlu0 %v454, 48
        %v750 = vpop.permute.xlu0 %749
        %v752 = vsel %vm469, %v748, 0
        %v755 = vsel %vm533, %v750, 0
        %757 = vmatprep.subr.bf16.mxu0 0
        %758 = vmatpush1.bf16.msra.mxu0 0
        %759 = vmatprep.subr.bf16.mxu0 0
        %760 = vmatpush1.bf16.msra.mxu0 0
        %761 = vmatprep.subr.bf16.mxu0 0
        %762 = vmatpush1.bf16.msra.mxu0 0
        %763 = vmatprep.subr.bf16.mxu0 0
        %764 = vmatpush1.bf16.msra.mxu0 0
        %765 = vmatprep.subr.bf16.mxu0 0
        %766 = vmatpush1.bf16.msra.mxu0 0
        %767 = vmatprep.subr.bf16.mxu0 0
        %768 = vmatpush1.bf16.msra.mxu0 0
        %769 = vmatprep.subr.bf16.mxu0 0
        %770 = vmatpush1.bf16.msra.mxu0 0
        %771 = vmatprep.subr.bf16.mxu0 0
        %772 = vmatpush1.bf16.msra.mxu0 %v755
        %773 = vmatprep.subr.bf16.mxu0 0
        %774 = vmatpush2.bf16.msra.mxu0 0
        %775 = vmatprep.subr.bf16.mxu0 0
        %776 = vmatpush2.bf16.msra.mxu0 0
        %777 = vmatprep.subr.bf16.mxu0 0
        %778 = vmatpush2.bf16.msra.mxu0 0
        %779 = vmatprep.subr.bf16.mxu0 0
        %780 = vmatpush2.bf16.msra.mxu0 0
        %781 = vmatprep.subr.bf16.mxu0 0
        %782 = vmatpush2.bf16.msra.mxu0 0
        %783 = vmatprep.subr.bf16.mxu0 0
        %784 = vmatpush2.bf16.msra.mxu0 0
        %785 = vmatprep.subr.bf16.mxu0 0
        %786 = vmatpush2.bf16.msra.mxu0 0
        %787 = vmatprep.subr.bf16.mxu0 0
        %788 = vmatpush2.bf16.msra.mxu0 0
        %789 = vmatprep.mubr.bf16.mxu0 0
        %790 = vmatmul.mubr.bf16.gmra.mxu0 %v752
        %v791 = vpop.f32.mrf.mxu0
        %v792 = vadd.f32 0.0, %v791
        %v793 = vpop.f32.mrf.mxu0
        %v794 = vpop.f32.mrf.mxu0
        %v795 = vpop.f32.mrf.mxu0
        %796 = vdwg.mxu0
        %797 = vrot.lane.b32.xlu0 %v454, 104
        %v798 = vpop.permute.xlu0 %797
        %799 = vrot.lane.b32.xlu0 %v454, 72
        %v800 = vpop.permute.xlu0 %799
        %v802 = vsel %vm469, %v798, 0
        %v805 = vsel %vm469, %v800, 0
        %807 = vmatprep.subr.bf16.mxu0 0
        %808 = vmatpush1.bf16.xpose.msra.mxu0 0
        %809 = vmatprep.subr.bf16.mxu0 0
        %810 = vmatpush1.bf16.xpose.msra.mxu0 0
        %811 = vmatprep.subr.bf16.mxu0 0
        %812 = vmatpush1.bf16.xpose.msra.mxu0 0
        %813 = vmatprep.subr.bf16.mxu0 0
        %814 = vmatpush1.bf16.xpose.msra.mxu0 0
        %815 = vmatprep.subr.bf16.mxu0 0
        %816 = vmatpush1.bf16.xpose.msra.mxu0 0
        %817 = vmatprep.subr.bf16.mxu0 0
        %818 = vmatpush1.bf16.xpose.msra.mxu0 0
        %819 = vmatprep.subr.bf16.mxu0 0
        %820 = vmatpush1.bf16.xpose.msra.mxu0 0
        %821 = vmatprep.subr.bf16.mxu0 0
        %822 = vmatpush1.bf16.xpose.msra.mxu0 %v805
        %823 = vmatprep.subr.bf16.mxu0 0
        %824 = vmatpush2.bf16.xpose.msra.mxu0 0
        %825 = vmatprep.subr.bf16.mxu0 0
        %826 = vmatpush2.bf16.xpose.msra.mxu0 0
        %827 = vmatprep.subr.bf16.mxu0 0
        %828 = vmatpush2.bf16.xpose.msra.mxu0 0
        %829 = vmatprep.subr.bf16.mxu0 0
        %830 = vmatpush2.bf16.xpose.msra.mxu0 0
        %831 = vmatprep.subr.bf16.mxu0 0
        %832 = vmatpush2.bf16.xpose.msra.mxu0 0
        %833 = vmatprep.subr.bf16.mxu0 0
        %834 = vmatpush2.bf16.xpose.msra.mxu0 0
        %835 = vmatprep.subr.bf16.mxu0 0
        %836 = vmatpush2.bf16.xpose.msra.mxu0 0
        %837 = vmatprep.subr.bf16.mxu0 0
        %838 = vmatpush2.bf16.xpose.msra.mxu0 0
        %839 = vmatprep.mubr.bf16.mxu0 0
        %840 = vmatmul.mubr.bf16.gmra.mxu0 %v802
        %v841 = vpop.f32.mrf.mxu0
        %v842 = vadd.f32 %v464, %v841
        %v843 = vpop.f32.mrf.mxu0
        %v844 = vpop.f32.mrf.mxu0
        %v845 = vpop.f32.mrf.mxu0
        %846 = vdwg.mxu0
        %v847 = vsel %vm469, %v842, -inf
        %848 = vmax.xlane.f32.xlu0 %v847
        %v849 = vpop.xlane.xlu0 %848
        %v850 = vsub.f32 %v842, %v849
        %v851 = vmul.f32 %v850, 1.442695
        %v852 = vpow.pop %v851
        %v853 = vsel %vm469, %v852, 0.0
        %854 = vadd.xlane.f32.xlu0 %v853
        %v855 = vpop.xlane.xlu0 %854
        %v856 = vrcp.pop %v855
        %v857 = vmul.f32 %v852, %v856
        %v858 = vpack.c.bf16 %v857, %v857
        %859 = vrot.lane.b32.xlu0 %v454, 40
        %v860 = vpop.permute.xlu0 %859
        %v862 = vsel %vm469, %v858, 0
        %v865 = vsel %vm533, %v860, 0
        %867 = vmatprep.subr.bf16.mxu0 0
        %868 = vmatpush1.bf16.msra.mxu0 0
        %869 = vmatprep.subr.bf16.mxu0 0
        %870 = vmatpush1.bf16.msra.mxu0 0
        %871 = vmatprep.subr.bf16.mxu0 0
        %872 = vmatpush1.bf16.msra.mxu0 0
        %873 = vmatprep.subr.bf16.mxu0 0
        %874 = vmatpush1.bf16.msra.mxu0 0
        %875 = vmatprep.subr.bf16.mxu0 0
        %876 = vmatpush1.bf16.msra.mxu0 0
        %877 = vmatprep.subr.bf16.mxu0 0
        %878 = vmatpush1.bf16.msra.mxu0 0
        %879 = vmatprep.subr.bf16.mxu0 0
        %880 = vmatpush1.bf16.msra.mxu0 0
        %881 = vmatprep.subr.bf16.mxu0 0
        %882 = vmatpush1.bf16.msra.mxu0 %v865
        %883 = vmatprep.subr.bf16.mxu0 0
        %884 = vmatpush2.bf16.msra.mxu0 0
        %885 = vmatprep.subr.bf16.mxu0 0
        %886 = vmatpush2.bf16.msra.mxu0 0
        %887 = vmatprep.subr.bf16.mxu0 0
        %888 = vmatpush2.bf16.msra.mxu0 0
        %889 = vmatprep.subr.bf16.mxu0 0
        %890 = vmatpush2.bf16.msra.mxu0 0
        %891 = vmatprep.subr.bf16.mxu0 0
        %892 = vmatpush2.bf16.msra.mxu0 0
        %893 = vmatprep.subr.bf16.mxu0 0
        %894 = vmatpush2.bf16.msra.mxu0 0
        %895 = vmatprep.subr.bf16.mxu0 0
        %896 = vmatpush2.bf16.msra.mxu0 0
        %897 = vmatprep.subr.bf16.mxu0 0
        %898 = vmatpush2.bf16.msra.mxu0 0
        %899 = vmatprep.mubr.bf16.mxu0 0
        %900 = vmatmul.mubr.bf16.gmra.mxu0 %v862
        %v901 = vpop.f32.mrf.mxu0
        %v902 = vadd.f32 0.0, %v901
        %v903 = vpop.f32.mrf.mxu0
        %v904 = vpop.f32.mrf.mxu0
        %v905 = vpop.f32.mrf.mxu0
        %906 = vdwg.mxu0
        %908 = vrot.lane.b32.xlu0 %v682, 8
        %v909 = vpop.permute.xlu0 %908
        %912 = vrot.lane.b32.xlu0 %v792, 16
        %v913 = vpop.permute.xlu0 %912
        %916 = vrot.lane.b32.xlu0 %v902, 24
        %v917 = vpop.permute.xlu0 %916
        %v919 = vsel %vm469, %v572, %v909
        %vm920 = vcmask 130048
        %v921 = vsel %vm920, %v919, %v913
        %vm922 = vcmask 195584
        %v923 = vsel %vm922, %v921, %v917
        %v924 = vpack.c.bf16 %v923, %v923
        %v925 = vld [vmem:[#allocation8] sm:$0xf]
        %v926 = vld [vmem:[#allocation8 + $0x4] sm:$0xf]
        %v927 = vld [vmem:[#allocation8 + $0x8] sm:$0xf]
        %v928 = vld [vmem:[#allocation8 + $0xc] sm:$0xf]
        %v929 = vld [vmem:[%s5] sm:$0x1]
        %v931 = vlaneseq
        %v932 = vshrl.u32 %v931, 7
        %v933 = vsub.s32 0, %v932
        %v934 = vrot.slane %v929, %v933
        %v940 = vunpack.c.l.b16 %v925
        %v941 = vunpack.c.l.b16 %v926
        %v942 = vunpack.c.l.b16 %v927
        %v943 = vunpack.c.l.b16 %v928
        %v944 = vpack.c.b16 %v941, %v940
        %v945 = vpack.c.b16 %v943, %v942
        %v949 = vsel %vm410, %v924, 0
        %951 = vmatprep.subr.bf16.mxu0 0
        %952 = vmatpush1.bf16.msra.mxu0 0
        %953 = vmatprep.subr.bf16.mxu0 0
        %954 = vmatpush1.bf16.msra.mxu0 0
        %955 = vmatprep.subr.bf16.mxu0 0
        %956 = vmatpush1.bf16.msra.mxu0 0
        %957 = vmatprep.subr.bf16.mxu0 0
        %958 = vmatpush1.bf16.msra.mxu0 0
        %959 = vmatprep.subr.bf16.mxu0 0
        %960 = vmatpush1.bf16.msra.mxu0 0
        %961 = vmatprep.subr.bf16.mxu0 0
        %962 = vmatpush1.bf16.msra.mxu0 0
        %963 = vmatprep.subr.bf16.mxu0 0
        %964 = vmatpush1.bf16.msra.mxu0 %v945
        %965 = vmatprep.subr.bf16.mxu0 0
        %966 = vmatpush1.bf16.msra.mxu0 %v944
        %967 = vmatprep.subr.bf16.mxu0 0
        %968 = vmatpush2.bf16.msra.mxu0 0
        %969 = vmatprep.subr.bf16.mxu0 0
        %970 = vmatpush2.bf16.msra.mxu0 0
        %971 = vmatprep.subr.bf16.mxu0 0
        %972 = vmatpush2.bf16.msra.mxu0 0
        %973 = vmatprep.subr.bf16.mxu0 0
        %974 = vmatpush2.bf16.msra.mxu0 0
        %975 = vmatprep.subr.bf16.mxu0 0
        %976 = vmatpush2.bf16.msra.mxu0 0
        %977 = vmatprep.subr.bf16.mxu0 0
        %978 = vmatpush2.bf16.msra.mxu0 0
        %979 = vmatprep.subr.bf16.mxu0 0
        %980 = vmatpush2.bf16.msra.mxu0 0
        %981 = vmatprep.subr.bf16.mxu0 0
        %982 = vmatpush2.bf16.msra.mxu0 0
        %983 = vmatprep.mubr.bf16.mxu0 0
        %984 = vmatmul.mubr.bf16.gmra.mxu0 %v949
        %v985 = vpop.f32.mrf.mxu0
        %v986 = vadd.f32 %v934, %v985
        %v987 = vpop.f32.mrf.mxu0
        %v988 = vpop.f32.mrf.mxu0
        %v989 = vpop.f32.mrf.mxu0
        %990 = vdwg.mxu0
        %v991 = vadd.f32 %v986, %v385
        %v992 = vsel %vm410, %v991, 0.0
        %993 = vadd.xlane.f32.xlu0 %v992
        %v994 = vpop.xlane.xlu0 %993
        %v995 = vrcp.pop 32.0
        %v996 = vmul.f32 %v994, %v995
        %v997 = vsub.f32 %v991, %v996
        %v998 = vmul.f32 %v997, %v997
        %v999 = vsel %vm410, %v998, 0.0
        %1000 = vadd.xlane.f32.xlu0 %v999
        %v1001 = vpop.xlane.xlu0 %1000
        %v1002 = vmul.f32 %v1001, %v995
        %v1003 = vadd.f32 %v1002, 1e-12
        %v1004 = vrsqrt.pop %v1003
        %v1005 = vmul.f32 %v997, %v1004
        %v1006 = vld [vmem:[%s6] sm:$0x1]
        %v1008 = vlaneseq
        %v1009 = vshrl.u32 %v1008, 7
        %v1010 = vsub.s32 0, %v1009
        %v1011 = vrot.slane %v1006, %v1010
        %v1013 = vmul.f32 %v1005, %v1011
        %v1014 = vld [vmem:[%s7] sm:$0x1]
        %v1016 = vlaneseq
        %v1017 = vshrl.u32 %v1016, 7
        %v1018 = vsub.s32 0, %v1017
        %v1019 = vrot.slane %v1014, %v1018
        %v1021 = vadd.f32 %v1013, %v1019
        %1022 = vst.msk [vmem:[%s383] sm:$0xff] %vm410, %v1021
        %s1023 = sand.u32 %s215, 1
        %s1024 = scalar_lea.sflag [#allocation4], %s1023
        %s1025 = sand.u32 %s215, 1
        %s1026 = smul.addr %s1025, 8
        %s1027 = scalar_lea.vmem [#allocation10], %s1026
        // Predicated region
        $region69: #{tpu_custom_call.1} parent=51 // pred_check
          %p1028 = pneg %p225
        $region70: #{tpu_custom_call.1} parent=51 // pred_check_branch
          %1030 = sbr.rel (%p1028) target = $region72
        $region71: #{tpu_custom_call.1} parent=51 // pred_region
          %s1032 = ssub.s32 128, 128
          %1033 = vsyncadd %s1024, %s1032
          %s1034 = smul.addr %s29, 128
          %s1035 = scalar_lea.hbm %s8, %s1034
          %s1037 = sshll.u32 %s1027, 4
          %s1038 = int_to_ptr.vmem [resolvable:$true] %s1037
          %1040 = dma.vmem_to_hbm [thread:$0]  %s1038, 128, %s1035, %s1024
        $region72: #{tpu_custom_call.1} parent=51 // pred_fallthru
          _
      $region52: #{tpu_custom_call.1} parent=5 // pred_fallthru
        _
      %p1041 = scmp.le.s32.totalorder 2, %s24
      // Predicated region
      $region73: #{tpu_custom_call.1} parent=5 // pred_check
        %p1042 = pneg %p1041
      $region74: #{tpu_custom_call.1} parent=5 // pred_check_branch
        %1044 = sbr.rel (%p1042) target = $region76
      $region75: #{tpu_custom_call.1} parent=5 // pred_region
        %s1045 = ssub.s32 %s24, 2
        // Predicated region
        $region77: #{tpu_custom_call.1} parent=75 // pred_check
          %p1046 = pneg %p231
        $region78: #{tpu_custom_call.1} parent=75 // pred_check_branch
          %1048 = sbr.rel (%p1046) target = $region80
        $region79: #{tpu_custom_call.1} parent=75 // pred_region
          %s1049 = sand.u32 %s216, 1
          %s1050 = scalar_lea.sflag [#allocation4], %s1049
          %s1051 = sand.u32 %s216, 1
          %s1052 = smul.addr %s1051, 8
          %s1053 = scalar_lea.vmem [#allocation10], %s1052
          %1054 = dma.done %s1050, 128
        $region80: #{tpu_custom_call.1} parent=75 // pred_fallthru
          _
      $region76: #{tpu_custom_call.1} parent=5 // pred_fallthru
        _
    $region6: #{tpu_custom_call.1} parent=1 // loop_footer
      %s28 = sadd.s32 1, %s24
    $region7: #{tpu_custom_call.1} parent=1 // loop_footer_branch
      %23 = sbr.rel target = $region3
    $region8: #{tpu_custom_call.1} parent=1 // loop_exit
      _
    %1055 = vsyncpa [#allocation3], 1
    %s1056 = scalar_lea.sflag [#allocation3], 1
    %1057 = vsyncpa %s1056, 1
    %1058 = vsyncpa [#allocation6], 1
    %s1059 = scalar_lea.sflag [#allocation6], 1
    %1060 = vsyncpa %s1059, 1
    %1061 = vsyncpa [#allocation9], 1
    %1062 = vsyncpa [#allocation4], 1
    %s1063 = scalar_lea.sflag [#allocation4], 1
    %1064 = vsyncpa %s1063, 1

</llo_original>
